<compile_context>
chip_gen: v6e
topology: v6e:2x2x1
jax: 0.10.0
libtpu: 0.0.40
codegen_flags: <defaults>
</compile_context>

<pallas_src>
import numpy as np
import jax
import jax.numpy as jnp
from jax import lax
from jax.experimental import pallas as pl
from jax.experimental.pallas import tpu as pltpu


# ------------------------------ fused kernel ------------------------------ #

def _mnet_fused_kernel(x_ref,
                       w0_ref, b0_ref,   # conv0 folded to dense matmul [256 ,1152]
                       w1_ref, b1_ref,   # conv1 folded to dense matmul [1152, 256]
                       w2_ref, b2_ref,   # fc0 (rows permuted)          [256 , 128]
                       w3_ref, b3_ref,   # fc1                          [128 ,  64]
                       w4_ref, b4_ref,   # fc2                          [64  ,   5]
                       o_ref):
    f32 = jnp.float32
    h = x_ref[...]                                                     # [B, 256]
    h = jnp.maximum(jnp.dot(h, w0_ref[...], preferred_element_type=f32)
                    + b0_ref[...], 0.0)                                # [B, 1152]
    h = jnp.maximum(jnp.dot(h, w1_ref[...], preferred_element_type=f32)
                    + b1_ref[...], 0.0)                                # [B, 256]
    h = jnp.maximum(jnp.dot(h, w2_ref[...], preferred_element_type=f32)
                    + b2_ref[...], 0.0)                                # [B, 128]
    # TODO(synk): Dropout(0.2) implemented as identity (eval semantics);
    # training-mode stochastic dropout not reproduced.
    h = jnp.maximum(jnp.dot(h, w3_ref[...], preferred_element_type=f32)
                    + b3_ref[...], 0.0)                                # [B, 64]
    o_ref[...] = (jnp.dot(h, w4_ref[...], preferred_element_type=f32)
                  + b4_ref[...]).astype(o_ref.dtype)                   # [B, 5]


def myrmexnet_forward(fused, x):
    """x: [B, 1, 16, 16] float32 -> logits [B, nclasses]. One pallas_call."""
    B = x.shape[0]
    xf = x.reshape(B, -1).astype(jnp.float32)   # NCHW flatten (C=1 -> h*16 + w)
    args = (xf,
            fused["w0"], fused["b0"], fused["w1"], fused["b1"],
            fused["w2"], fused["b2"], fused["w3"], fused["b3"],
            fused["w4"], fused["b4"])
    nclasses = fused["w4"].shape[1]

    flops = 2 * B * sum(fused[f"w{i}"].shape[0] * fused[f"w{i}"].shape[1]
                        for i in range(5))
    bytes_accessed = sum(int(np.prod(a.shape)) * 4 for a in args) + B * nclasses * 4

    vmem = pl.BlockSpec(memory_space=pltpu.MemorySpace.VMEM)   # full-array, VMEM
    return pl.pallas_call(
        _mnet_fused_kernel,
        out_shape=jax.ShapeDtypeStruct((B, nclasses), jnp.float32),
        in_specs=[vmem] * len(args),
        out_specs=vmem,
        cost_estimate=pl.CostEstimate(flops=flops, transcendentals=0,
                                      bytes_accessed=bytes_accessed),
    )(*args)


# -------------------- one-time parameter preprocessing --------------------- #

def _dense_conv_matrix(w, b, in_h, in_w, stride, in_layout):
    """Fold a PyTorch Conv2d (OIHW weights, VALID padding) into a dense matmul.

    Returns (Wd, bd[1,N], OH, OW) such that, for an input flattened per
    `in_layout` ("CHW" or "HWC"), `x_flat @ Wd + bd` equals the conv output
    flattened channels-last (column = (oh*OW + ow)*Cout + c).
    """
    w = np.asarray(w, np.float32)
    b = np.asarray(b, np.float32)
    Cout, Cin, KH, KW = w.shape
    sh, sw = stride
    OH = (in_h - KH) // sh + 1
    OW = (in_w - KW) // sw + 1
    Wd = np.zeros((Cin * in_h * in_w, OH * OW * Cout), np.float32)
    bd = np.tile(b, OH * OW)
    for oh in range(OH):
        for ow in range(OW):
            ocol = (oh * OW + ow) * Cout
            for ki in range(KH):
                for kj in range(KW):
                    h = oh * sh + ki
                    ww = ow * sw + kj
                    if in_layout == "CHW":
                        for c0 in range(Cin):
                            icol = c0 * in_h * in_w + h * in_w + ww
                            Wd[icol, ocol:ocol + Cout] = w[:, c0, ki, kj]
                    else:  # "HWC"
                        icol = (h * in_w + ww) * Cin
                        Wd[icol:icol + Cin, ocol:ocol + Cout] = w[:, :, ki, kj].T
    return jnp.asarray(Wd), jnp.asarray(bd)[None, :], OH, OW


def prepare_fused_params(params, input_hw=(16, 16), stride=(2, 2)):
    """Fold convs into dense matmul matrices, permute fc0 rows to match the
    channels-last flatten, reshape biases to [1, N].  Runs once, outside jit."""
    H, W = input_hw
    w0d, b0d, oh0, ow0 = _dense_conv_matrix(params["conv0_w"], params["conv0_b"],
                                            H, W, stride, in_layout="CHW")
    w1d, b1d, oh1, ow1 = _dense_conv_matrix(params["conv1_w"], params["conv1_b"],
                                            oh0, ow0, stride, in_layout="HWC")

    # fc0 expects PyTorch's (C, H, W) flatten; our conv output is (H, W, C).
    Cout1 = params["conv1_w"].shape[0]
    perm = np.zeros(Cout1 * oh1 * ow1, np.int32)
    for h in range(oh1):
        for w in range(ow1):
            for c in range(Cout1):
                perm[(h * ow1 + w) * Cout1 + c] = c * oh1 * ow1 + h * ow1 + w
    fc0_w_hwc = jnp.asarray(params["fc0_w"])[jnp.asarray(perm), :]

    return {
        "w0": w0d, "b0": b0d,
        "w1": w1d, "b1": b1d,
        "w2": fc0_w_hwc,       "b2": params["fc0_b"][None, :],
        "w3": params["fc1_w"], "b3": params["fc1_b"][None, :],
        "w4": params["fc2_w"], "b4": params["fc2_b"][None, :],
    }


# --------------------------- parameters / reference ------------------------ #

def init_params(key):
    """Deterministic synthetic init (uniform +-1/sqrt(fan_in), like PyTorch)."""
    ks = jax.random.split(key, 10)

    def u(k, shape, fan_in):
        bound = 1.0 / float(fan_in) ** 0.5
        return jax.random.uniform(k, shape, jnp.float32, -bound, bound)

    return {
        # conv2d_0: Conv2d(1, 32, kernel=(5,5), stride=(2,2), padding=0)
        "conv0_w": u(ks[0], (32, 1, 5, 5), 1 * 5 * 5),
        "conv0_b": u(ks[1], (32,), 1 * 5 * 5),
        # conv2d_1: Conv2d(32, 64, kernel=(3,3), stride=(2,2), padding=0)
        "conv1_w": u(ks[2], (64, 32, 3, 3), 32 * 3 * 3),
        "conv1_b": u(ks[3], (64,), 32 * 3 * 3),
        # conv_outshape = (64, 2, 2) -> flatten = 256
        "fc0_w": u(ks[4], (256, 128), 256),   # stored [in, out]
        "fc0_b": u(ks[5], (128,), 256),
        "fc1_w": u(ks[6], (128, 64), 128),
        "fc1_b": u(ks[7], (64,), 128),
        "fc2_w": u(ks[8], (64, 5), 64),
        "fc2_b": u(ks[9], (5,), 64),
    }


def reference_forward(params, x):
    """Plain-JAX reference with the PyTorch MyrmexNet semantics (eval mode)."""
    hp = lax.Precision.HIGHEST
    h = lax.conv_general_dilated(x, params["conv0_w"], (2, 2), "VALID",
                                 dimension_numbers=("NCHW", "OIHW", "NCHW"),
                                 precision=hp)
    h = jnp.maximum(h + params["conv0_b"][None, :, None, None], 0.0)
    h = lax.conv_general_dilated(h, params["conv1_w"], (2, 2), "VALID",
                                 dimension_numbers=("NCHW", "OIHW", "NCHW"),
                                 precision=hp)
    h = jnp.maximum(h + params["conv1_b"][None, :, None, None], 0.0)
    h = h.reshape(x.shape[0], -1)                                  # (C,H,W) flatten
    h = jnp.maximum(jnp.dot(h, params["fc0_w"], precision=hp) + params["fc0_b"], 0.0)
    h = jnp.maximum(jnp.dot(h, params["fc1_w"], precision=hp) + params["fc1_b"], 0.0)
    return jnp.dot(h, params["fc2_w"], precision=hp) + params["fc2_b"]


if __name__ == "__main__":
    key = jax.random.PRNGKey(0)
    pkey, xkey = jax.random.split(key)
    params = init_params(pkey)
    fused = prepare_fused_params(params)        # one-time, outside the hot path

    # batch=2, nchannels=1, 16x16 myrmex sample (module defaults)
    x = jax.random.normal(xkey, (2, 1, 16, 16), dtype=jnp.float32)

    fwd = jax.jit(myrmexnet_forward)
    out = jax.block_until_ready(fwd(fused, x))

    assert out.shape == (2, 5), out.shape
    assert bool(jnp.all(jnp.isfinite(out)))

    # Sanity check against the plain-JAX reference of the PyTorch module.
    ref = reference_forward(params, x)
    assert bool(jnp.allclose(out, ref, atol=1e-2, rtol=1e-2)), (
        float(jnp.max(jnp.abs(out - ref))))

    print("KERNEL_OK")
</pallas_src>

<mosaic_0001>
module attributes {stable_mosaic.version = 11 : i64} {
  func.func @_mnet_fused_kernel(%arg0: memref<2x256xf32, #tpu.memory_space<vmem>>, %arg1: memref<256x1152xf32, #tpu.memory_space<vmem>>, %arg2: memref<1x1152xf32, #tpu.memory_space<vmem>>, %arg3: memref<1152x256xf32, #tpu.memory_space<vmem>>, %arg4: memref<1x256xf32, #tpu.memory_space<vmem>>, %arg5: memref<256x128xf32, #tpu.memory_space<vmem>>, %arg6: memref<1x128xf32, #tpu.memory_space<vmem>>, %arg7: memref<128x64xf32, #tpu.memory_space<vmem>>, %arg8: memref<1x64xf32, #tpu.memory_space<vmem>>, %arg9: memref<64x5xf32, #tpu.memory_space<vmem>>, %arg10: memref<1x5xf32, #tpu.memory_space<vmem>>, %arg11: memref<2x5xf32, #tpu.memory_space<vmem>>) attributes {dimension_semantics = [], scalar_prefetch = 0 : i64, scratch_operands = 0 : i64, tpu.core_type = #tpu.core_type<tc>} {
    %c0 = arith.constant 0 : index
    %c0_0 = arith.constant 0 : index
    %0 = vector.load %arg0[%c0, %c0_0] : memref<2x256xf32, #tpu.memory_space<vmem>>, vector<2x256xf32>
    %c0_1 = arith.constant 0 : index
    %c0_2 = arith.constant 0 : index
    %1 = vector.load %arg1[%c0_1, %c0_2] : memref<256x1152xf32, #tpu.memory_space<vmem>>, vector<256x1152xf32>
    %cst = arith.constant dense<0.000000e+00> : vector<2x1152xf32>
    %2 = tpu.matmul %0, %1, %cst {dimension_numbers = #tpu.dot_dimension_numbers<[1], [0], [0], [1], [0, 0, 1, 1], [], []>} : vector<2x256xf32>, vector<256x1152xf32>, vector<2x1152xf32> -> vector<2x1152xf32>
    %c0_3 = arith.constant 0 : index
    %c0_4 = arith.constant 0 : index
    %3 = vector.load %arg2[%c0_3, %c0_4] : memref<1x1152xf32, #tpu.memory_space<vmem>>, vector<1x1152xf32>
    %4 = vector.broadcast %3 : vector<1x1152xf32> to vector<2x1152xf32>
    %5 = arith.addf %2, %4 : vector<2x1152xf32>
    %cst_5 = arith.constant 0.000000e+00 : f32
    %6 = vector.broadcast %cst_5 : f32 to vector<2x1152xf32>
    %7 = arith.maximumf %5, %6 : vector<2x1152xf32>
    %c0_6 = arith.constant 0 : index
    %c0_7 = arith.constant 0 : index
    %8 = vector.load %arg3[%c0_6, %c0_7] : memref<1152x256xf32, #tpu.memory_space<vmem>>, vector<1152x256xf32>
    %cst_8 = arith.constant dense<0.000000e+00> : vector<2x256xf32>
    %9 = tpu.matmul %7, %8, %cst_8 {dimension_numbers = #tpu.dot_dimension_numbers<[1], [0], [0], [1], [0, 0, 1, 1], [], []>} : vector<2x1152xf32>, vector<1152x256xf32>, vector<2x256xf32> -> vector<2x256xf32>
    %c0_9 = arith.constant 0 : index
    %c0_10 = arith.constant 0 : index
    %10 = vector.load %arg4[%c0_9, %c0_10] : memref<1x256xf32, #tpu.memory_space<vmem>>, vector<1x256xf32>
    %11 = vector.broadcast %10 : vector<1x256xf32> to vector<2x256xf32>
    %12 = arith.addf %9, %11 : vector<2x256xf32>
    %cst_11 = arith.constant 0.000000e+00 : f32
    %13 = vector.broadcast %cst_11 : f32 to vector<2x256xf32>
    %14 = arith.maximumf %12, %13 : vector<2x256xf32>
    %c0_12 = arith.constant 0 : index
    %c0_13 = arith.constant 0 : index
    %15 = vector.load %arg5[%c0_12, %c0_13] : memref<256x128xf32, #tpu.memory_space<vmem>>, vector<256x128xf32>
    %cst_14 = arith.constant dense<0.000000e+00> : vector<2x128xf32>
    %16 = tpu.matmul %14, %15, %cst_14 {dimension_numbers = #tpu.dot_dimension_numbers<[1], [0], [0], [1], [0, 0, 1, 1], [], []>} : vector<2x256xf32>, vector<256x128xf32>, vector<2x128xf32> -> vector<2x128xf32>
    %c0_15 = arith.constant 0 : index
    %c0_16 = arith.constant 0 : index
    %17 = vector.load %arg6[%c0_15, %c0_16] : memref<1x128xf32, #tpu.memory_space<vmem>>, vector<1x128xf32>
    %18 = vector.broadcast %17 : vector<1x128xf32> to vector<2x128xf32>
    %19 = arith.addf %16, %18 : vector<2x128xf32>
    %cst_17 = arith.constant 0.000000e+00 : f32
    %20 = vector.broadcast %cst_17 : f32 to vector<2x128xf32>
    %21 = arith.maximumf %19, %20 : vector<2x128xf32>
    %c0_18 = arith.constant 0 : index
    %c0_19 = arith.constant 0 : index
    %22 = vector.load %arg7[%c0_18, %c0_19] : memref<128x64xf32, #tpu.memory_space<vmem>>, vector<128x64xf32>
    %cst_20 = arith.constant dense<0.000000e+00> : vector<2x64xf32>
    %23 = tpu.matmul %21, %22, %cst_20 {dimension_numbers = #tpu.dot_dimension_numbers<[1], [0], [0], [1], [0, 0, 1, 1], [], []>} : vector<2x128xf32>, vector<128x64xf32>, vector<2x64xf32> -> vector<2x64xf32>
    %c0_21 = arith.constant 0 : index
    %c0_22 = arith.constant 0 : index
    %24 = vector.load %arg8[%c0_21, %c0_22] : memref<1x64xf32, #tpu.memory_space<vmem>>, vector<1x64xf32>
    %25 = vector.broadcast %24 : vector<1x64xf32> to vector<2x64xf32>
    %26 = arith.addf %23, %25 : vector<2x64xf32>
    %cst_23 = arith.constant 0.000000e+00 : f32
    %27 = vector.broadcast %cst_23 : f32 to vector<2x64xf32>
    %28 = arith.maximumf %26, %27 : vector<2x64xf32>
    %c0_24 = arith.constant 0 : index
    %c0_25 = arith.constant 0 : index
    %29 = vector.load %arg9[%c0_24, %c0_25] : memref<64x5xf32, #tpu.memory_space<vmem>>, vector<64x5xf32>
    %cst_26 = arith.constant dense<0.000000e+00> : vector<2x5xf32>
    %30 = tpu.matmul %28, %29, %cst_26 {dimension_numbers = #tpu.dot_dimension_numbers<[1], [0], [0], [1], [0, 0, 1, 1], [], []>} : vector<2x64xf32>, vector<64x5xf32>, vector<2x5xf32> -> vector<2x5xf32>
    %c0_27 = arith.constant 0 : index
    %c0_28 = arith.constant 0 : index
    %31 = vector.load %arg10[%c0_27, %c0_28] : memref<1x5xf32, #tpu.memory_space<vmem>>, vector<1x5xf32>
    %32 = vector.broadcast %31 : vector<1x5xf32> to vector<2x5xf32>
    %33 = arith.addf %30, %32 : vector<2x5xf32>
    %c0_29 = arith.constant 0 : index
    %c0_30 = arith.constant 0 : index
    %34 = vector.load %arg11[%c0_29, %c0_30] : memref<2x5xf32, #tpu.memory_space<vmem>>, vector<2x5xf32>
    tpu.vector_store %arg11[%c0_29, %c0_30], %33 {strides = array<i32>} : memref<2x5xf32, #tpu.memory_space<vmem>>, vector<2x5xf32>,
    return
  }
}

</mosaic_0001>

<llo_original>
// kernel: myrmexnet_forward.1
$region0: #{myrmexnet_forward.1}
  #allocation0 [shape = 'u32[]', space=smem, size = 0x4, offset = 0x4, fixed_abs, tag = 'smem constant byte address 0x4 - core index']
  #allocation1 [shape = 'u32[144,128]{1,0:T(1,128)}', space=vmem, size = 0x12000, scoped, tag = 'internal scratch']
  %s0 = inlined_call_operand.vmem [shape: f32[2,256], index: 0, kind: input, shape index: {}]
  %s1 = inlined_call_operand.hbm [shape: f32[256,1152], index: 1, kind: input, shape index: {}]
  %s2 = inlined_call_operand.hbm [shape: f32[1,1152], index: 2, kind: input, shape index: {}]
  %s3 = inlined_call_operand.hbm [shape: f32[1152,256], index: 3, kind: input, shape index: {}]
  %s4 = inlined_call_operand.hbm [shape: f32[1,256], index: 4, kind: input, shape index: {}]
  %s5 = inlined_call_operand.hbm [shape: f32[256,128], index: 5, kind: input, shape index: {}]
  %s6 = inlined_call_operand.hbm [shape: f32[1,128], index: 6, kind: input, shape index: {}]
  %s7 = inlined_call_operand.vmem [shape: f32[128,64], index: 7, kind: input, shape index: {}]
  %s8 = inlined_call_operand.hbm [shape: f32[1,64], index: 8, kind: input, shape index: {}]
  %s9 = inlined_call_operand.vmem [shape: f32[64,5], index: 9, kind: input, shape index: {}]
  %s10 = inlined_call_operand.hbm [shape: f32[1,5], index: 10, kind: input, shape index: {}]
  %s11 = inlined_call_operand.hbm [shape: f32[2,5], index: 11, kind: output, shape index: {}]
  %s12 = sld [smem:[#allocation0]]
  $region86: #{myrmexnet_forward.1} parent=0
    _
  %s14 = ssub.s32 1, %s12
  %s15 = scalar_select 0, %s14, %s12
  $region1: #{myrmexnet_forward.1} parent=0
    #allocation2 [shape = 'u8[1179648]{0}', space=vmem, size = 0x120000, scoped, tag = 'input window, operand 1, single buffered']
    #allocation3 [shape = 's32[1]{0}', space=sflag, size = 0x4, scoped, tag = 'scoped memory for myrmexnet_forward.1']
    #allocation4 [shape = 's32[1]{0}', space=sflag, size = 0x4, scoped, tag = 'scoped memory for myrmexnet_forward.1']
    #allocation5 [shape = 'u8[4608]{0}', space=vmem, size = 0x1400, scoped, tag = 'input window, operand 2, single buffered']
    #allocation6 [shape = 's32[1]{0}', space=sflag, size = 0x4, scoped, tag = 'scoped memory for myrmexnet_forward.1']
    #allocation7 [shape = 'u8[1179648]{0}', space=vmem, size = 0x120000, scoped, tag = 'input window, operand 3, single buffered']
    #allocation8 [shape = 'u8[1024]{0}', space=vmem, size = 0x400, scoped, tag = 'input window, operand 4, single buffered']
    #allocation9 [shape = 's32[1]{0}', space=sflag, size = 0x4, scoped, tag = 'scoped memory for myrmexnet_forward.1']
    #allocation10 [shape = 'u8[131072]{0}', space=vmem, size = 0x20000, scoped, tag = 'input window, operand 5, single buffered']
    #allocation11 [shape = 'u8[512]{0}', space=vmem, size = 0x400, scoped, tag = 'input window, operand 6, single buffered']
    #allocation12 [shape = 's32[1]{0}', space=sflag, size = 0x4, scoped, tag = 'scoped memory for myrmexnet_forward.1']
    #allocation13 [shape = 'u8[512]{0}', space=vmem, size = 0x400, scoped, tag = 'input window, operand 8, single buffered']
    #allocation14 [shape = 'u8[512]{0}', space=vmem, size = 0x400, scoped, tag = 'input window, operand 10, single buffered']
    #allocation15 [shape = 's32[1]{0}', space=sflag, size = 0x4, scoped, tag = 'scoped memory for myrmexnet_forward.1']
    #allocation16 [shape = 'u8[1024]{0}', space=vmem, size = 0x400, scoped, tag = 'output window, operand 0, single buffered']
    %16 = vsyncpa [#allocation3], 0
    %17 = vsyncpa [#allocation6], 0
    %18 = vsyncpa [#allocation9], 0
    %19 = vsyncpa [#allocation12], 0
    %20 = vsyncpa [#allocation15], 0
    %21 = vsyncpa [#allocation4], 0
    // Predicated region
    $region2: #{myrmexnet_forward.1} parent=1 // pred_check
      _
    $region3: #{myrmexnet_forward.1} parent=1 // pred_check_branch
      %23 = sbr.rel (0) target = $region5
    $region4: #{myrmexnet_forward.1} parent=1 // pred_region
      _
    $region5: #{myrmexnet_forward.1} parent=1 // pred_fallthru
      _
    // Predicated region
    $region6: #{myrmexnet_forward.1} parent=1 // pred_check
      _
    $region7: #{myrmexnet_forward.1} parent=1 // pred_check_branch
      %25 = sbr.rel (0) target = $region9
    $region8: #{myrmexnet_forward.1} parent=1 // pred_region
      %s27 = ssub.s32 36864, 36864
      %28 = vsyncadd [#allocation3], %s27
      %s29 = sshll.u32 [#allocation2], 4
      %s30 = int_to_ptr.vmem [resolvable:$true] %s29
      %35 = dma.hbm_to_vmem [thread:$0]  %s1, 36864, %s30, [#allocation3], 1152, 1152, 72
    $region9: #{myrmexnet_forward.1} parent=1 // pred_fallthru
      _
    // Predicated region
    $region10: #{myrmexnet_forward.1} parent=1 // pred_check
      _
    $region11: #{myrmexnet_forward.1} parent=1 // pred_check_branch
      %37 = sbr.rel (0) target = $region13
    $region12: #{myrmexnet_forward.1} parent=1 // pred_region
      %s39 = ssub.s32 144, 144
      %40 = vsyncadd [#allocation6], %s39
      %s42 = sshll.u32 [#allocation5], 4
      %s43 = int_to_ptr.vmem [resolvable:$true] %s42
      %45 = dma.hbm_to_vmem [thread:$0]  %s2, 144, %s43, [#allocation6]
    $region13: #{myrmexnet_forward.1} parent=1 // pred_fallthru
      _
    // Predicated region
    $region14: #{myrmexnet_forward.1} parent=1 // pred_check
      _
    $region15: #{myrmexnet_forward.1} parent=1 // pred_check_branch
      %47 = sbr.rel (0) target = $region17
    $region16: #{myrmexnet_forward.1} parent=1 // pred_region
      %s49 = ssub.s32 36864, 36864
      %50 = vsyncadd [#allocation6], %s49
      %s51 = sshll.u32 [#allocation7], 4
      %s52 = int_to_ptr.vmem [resolvable:$true] %s51
      %57 = dma.hbm_to_vmem [thread:$0]  %s3, 36864, %s52, [#allocation6], 256, 256, 16
    $region17: #{myrmexnet_forward.1} parent=1 // pred_fallthru
      _
    // Predicated region
    $region18: #{myrmexnet_forward.1} parent=1 // pred_check
      _
    $region19: #{myrmexnet_forward.1} parent=1 // pred_check_branch
      %59 = sbr.rel (0) target = $region21
    $region20: #{myrmexnet_forward.1} parent=1 // pred_region
      %s61 = ssub.s32 32, 32
      %62 = vsyncadd [#allocation9], %s61
      %s64 = sshll.u32 [#allocation8], 4
      %s65 = int_to_ptr.vmem [resolvable:$true] %s64
      %67 = dma.hbm_to_vmem [thread:$0]  %s4, 32, %s65, [#allocation9]
    $region21: #{myrmexnet_forward.1} parent=1 // pred_fallthru
      _
    // Predicated region
    $region22: #{myrmexnet_forward.1} parent=1 // pred_check
      _
    $region23: #{myrmexnet_forward.1} parent=1 // pred_check_branch
      %69 = sbr.rel (0) target = $region25
    $region24: #{myrmexnet_forward.1} parent=1 // pred_region
      %s71 = ssub.s32 4096, 4096
      %72 = vsyncadd [#allocation9], %s71
      %s73 = sshll.u32 [#allocation10], 4
      %s74 = int_to_ptr.vmem [resolvable:$true] %s73
      %79 = dma.hbm_to_vmem [thread:$0]  %s5, 4096, %s74, [#allocation9], 128, 128, 8
    $region25: #{myrmexnet_forward.1} parent=1 // pred_fallthru
      _
    // Predicated region
    $region26: #{myrmexnet_forward.1} parent=1 // pred_check
      _
    $region27: #{myrmexnet_forward.1} parent=1 // pred_check_branch
      %81 = sbr.rel (0) target = $region29
    $region28: #{myrmexnet_forward.1} parent=1 // pred_region
      %s83 = ssub.s32 16, 16
      %84 = vsyncadd [#allocation12], %s83
      %s86 = sshll.u32 [#allocation11], 4
      %s87 = int_to_ptr.vmem [resolvable:$true] %s86
      %89 = dma.hbm_to_vmem [thread:$0]  %s6, 16, %s87, [#allocation12]
    $region29: #{myrmexnet_forward.1} parent=1 // pred_fallthru
      _
    // Predicated region
    $region30: #{myrmexnet_forward.1} parent=1 // pred_check
      _
    $region31: #{myrmexnet_forward.1} parent=1 // pred_check_branch
      %91 = sbr.rel (0) target = $region33
    $region32: #{myrmexnet_forward.1} parent=1 // pred_region
      _
    $region33: #{myrmexnet_forward.1} parent=1 // pred_fallthru
      _
    // Predicated region
    $region34: #{myrmexnet_forward.1} parent=1 // pred_check
      _
    $region35: #{myrmexnet_forward.1} parent=1 // pred_check_branch
      %93 = sbr.rel (0) target = $region37
    $region36: #{myrmexnet_forward.1} parent=1 // pred_region
      %s95 = ssub.s32 16, 16
      %96 = vsyncadd [#allocation12], %s95
      %s98 = sshll.u32 [#allocation13], 4
      %s99 = int_to_ptr.vmem [resolvable:$true] %s98
      %101 = dma.hbm_to_vmem [thread:$0]  %s8, 16, %s99, [#allocation12]
    $region37: #{myrmexnet_forward.1} parent=1 // pred_fallthru
      _
    // Predicated region
    $region38: #{myrmexnet_forward.1} parent=1 // pred_check
      _
    $region39: #{myrmexnet_forward.1} parent=1 // pred_check_branch
      %103 = sbr.rel (0) target = $region41
    $region40: #{myrmexnet_forward.1} parent=1 // pred_region
      _
    $region41: #{myrmexnet_forward.1} parent=1 // pred_fallthru
      _
    // Predicated region
    $region42: #{myrmexnet_forward.1} parent=1 // pred_check
      _
    $region43: #{myrmexnet_forward.1} parent=1 // pred_check_branch
      %105 = sbr.rel (0) target = $region45
    $region44: #{myrmexnet_forward.1} parent=1 // pred_region
      %s107 = ssub.s32 16, 16
      %108 = vsyncadd [#allocation15], %s107
      %s110 = sshll.u32 [#allocation14], 4
      %s111 = int_to_ptr.vmem [resolvable:$true] %s110
      %113 = dma.hbm_to_vmem [thread:$0]  %s10, 16, %s111, [#allocation15]
    $region45: #{myrmexnet_forward.1} parent=1 // pred_fallthru
      _
    // Predicated region
    $region46: #{myrmexnet_forward.1} parent=1 // pred_check
      _
    $region47: #{myrmexnet_forward.1} parent=1 // pred_check_branch
      %115 = sbr.rel (0) target = $region49
    $region48: #{myrmexnet_forward.1} parent=1 // pred_region
      %116 = dma.done [#allocation3], 36864
    $region49: #{myrmexnet_forward.1} parent=1 // pred_fallthru
      _
    // Predicated region
    $region50: #{myrmexnet_forward.1} parent=1 // pred_check
      _
    $region51: #{myrmexnet_forward.1} parent=1 // pred_check_branch
      %118 = sbr.rel (0) target = $region53
    $region52: #{myrmexnet_forward.1} parent=1 // pred_region
      %119 = dma.done [#allocation6], 144
    $region53: #{myrmexnet_forward.1} parent=1 // pred_fallthru
      _
    // Predicated region
    $region54: #{myrmexnet_forward.1} parent=1 // pred_check
      _
    $region55: #{myrmexnet_forward.1} parent=1 // pred_check_branch
      %121 = sbr.rel (0) target = $region57
    $region56: #{myrmexnet_forward.1} parent=1 // pred_region
      %122 = dma.done [#allocation6], 36864
    $region57: #{myrmexnet_forward.1} parent=1 // pred_fallthru
      _
    // Predicated region
    $region58: #{myrmexnet_forward.1} parent=1 // pred_check
      _
    $region59: #{myrmexnet_forward.1} parent=1 // pred_check_branch
      %124 = sbr.rel (0) target = $region61
    $region60: #{myrmexnet_forward.1} parent=1 // pred_region
      %125 = dma.done [#allocation9], 32
    $region61: #{myrmexnet_forward.1} parent=1 // pred_fallthru
      _
    // Predicated region
    $region62: #{myrmexnet_forward.1} parent=1 // pred_check
      _
    $region63: #{myrmexnet_forward.1} parent=1 // pred_check_branch
      %127 = sbr.rel (0) target = $region65
    $region64: #{myrmexnet_forward.1} parent=1 // pred_region
      %128 = dma.done [#allocation9], 4096
    $region65: #{myrmexnet_forward.1} parent=1 // pred_fallthru
      _
    // Predicated region
    $region66: #{myrmexnet_forward.1} parent=1 // pred_check
      _
    $region67: #{myrmexnet_forward.1} parent=1 // pred_check_branch
      %130 = sbr.rel (0) target = $region69
    $region68: #{myrmexnet_forward.1} parent=1 // pred_region
      %131 = dma.done [#allocation12], 16
    $region69: #{myrmexnet_forward.1} parent=1 // pred_fallthru
      _
    // Predicated region
    $region70: #{myrmexnet_forward.1} parent=1 // pred_check
      _
    $region71: #{myrmexnet_forward.1} parent=1 // pred_check_branch
      %133 = sbr.rel (0) target = $region73
    $region72: #{myrmexnet_forward.1} parent=1 // pred_region
      %134 = dma.done [#allocation12], 16
    $region73: #{myrmexnet_forward.1} parent=1 // pred_fallthru
      _
    // Predicated region
    $region74: #{myrmexnet_forward.1} parent=1 // pred_check
      _
    $region75: #{myrmexnet_forward.1} parent=1 // pred_check_branch
      %136 = sbr.rel (0) target = $region77
    $region76: #{myrmexnet_forward.1} parent=1 // pred_region
      %137 = dma.done [#allocation15], 16
    $region77: #{myrmexnet_forward.1} parent=1 // pred_fallthru
      _
    %v138 = vld [vmem:[%s0] sm:$0xf]
    %v139 = vld [vmem:[#allocation2] sm:$0xff]
    %v140 = vld [vmem:[#allocation2 + $0x8] sm:$0xff]
    %v141 = vld [vmem:[#allocation2 + $0x10] sm:$0xff]
    %v142 = vld [vmem:[#allocation2 + $0x18] sm:$0xff]
    %v143 = vld [vmem:[#allocation2 + $0x20] sm:$0xff]
    %v144 = vld [vmem:[#allocation2 + $0x28] sm:$0xff]
    %v145 = vld [vmem:[#allocation2 + $0x30] sm:$0xff]
    %v146 = vld [vmem:[#allocation2 + $0x38] sm:$0xff]
    %v147 = vld [vmem:[#allocation2 + $0x40] sm:$0xff]
    %v148 = vld [vmem:[#allocation2 + $0x48] sm:$0xff]
    %v149 = vld [vmem:[#allocation2 + $0x50] sm:$0xff]
    %v150 = vld [vmem:[#allocation2 + $0x58] sm:$0xff]
    %v151 = vld [vmem:[#allocation2 + $0x60] sm:$0xff]
    %v152 = vld [vmem:[#allocation2 + $0x68] sm:$0xff]
    %v153 = vld [vmem:[#allocation2 + $0x70] sm:$0xff]
    %v154 = vld [vmem:[#allocation2 + $0x78] sm:$0xff]
    %v155 = vld [vmem:[#allocation2 + $0x80] sm:$0xff]
    %v156 = vld [vmem:[#allocation2 + $0x88] sm:$0xff]
    %v157 = vld [vmem:[#allocation2 + $0x90] sm:$0xff]
    %v158 = vld [vmem:[#allocation2 + $0x98] sm:$0xff]
    %v159 = vld [vmem:[#allocation2 + $0xa0] sm:$0xff]
    %v160 = vld [vmem:[#allocation2 + $0xa8] sm:$0xff]
    %v161 = vld [vmem:[#allocation2 + $0xb0] sm:$0xff]
    %v162 = vld [vmem:[#allocation2 + $0xb8] sm:$0xff]
    %v163 = vld [vmem:[#allocation2 + $0xc0] sm:$0xff]
    %v164 = vld [vmem:[#allocation2 + $0xc8] sm:$0xff]
    %v165 = vld [vmem:[#allocation2 + $0xd0] sm:$0xff]
    %v166 = vld [vmem:[#allocation2 + $0xd8] sm:$0xff]
    %v167 = vld [vmem:[#allocation2 + $0xe0] sm:$0xff]
    %v168 = vld [vmem:[#allocation2 + $0xe8] sm:$0xff]
    %v169 = vld [vmem:[#allocation2 + $0xf0] sm:$0xff]
    %v170 = vld [vmem:[#allocation2 + $0xf8] sm:$0xff]
    %v171 = vld [vmem:[#allocation2 + $0x100] sm:$0xff]
    %v172 = vld [vmem:[#allocation2 + $0x108] sm:$0xff]
    %v173 = vld [vmem:[#allocation2 + $0x110] sm:$0xff]
    %v174 = vld [vmem:[#allocation2 + $0x118] sm:$0xff]
    %v175 = vld [vmem:[#allocation2 + $0x120] sm:$0xff]
    %v176 = vld [vmem:[#allocation2 + $0x128] sm:$0xff]
    %v177 = vld [vmem:[#allocation2 + $0x130] sm:$0xff]
    %v178 = vld [vmem:[#allocation2 + $0x138] sm:$0xff]
    %v179 = vld [vmem:[#allocation2 + $0x140] sm:$0xff]
    %v180 = vld [vmem:[#allocation2 + $0x148] sm:$0xff]
    %v181 = vld [vmem:[#allocation2 + $0x150] sm:$0xff]
    %v182 = vld [vmem:[#allocation2 + $0x158] sm:$0xff]
    %v183 = vld [vmem:[#allocation2 + $0x160] sm:$0xff]
    %v184 = vld [vmem:[#allocation2 + $0x168] sm:$0xff]
    %v185 = vld [vmem:[#allocation2 + $0x170] sm:$0xff]
    %v186 = vld [vmem:[#allocation2 + $0x178] sm:$0xff]
    %v187 = vld [vmem:[#allocation2 + $0x180] sm:$0xff]
    %v188 = vld [vmem:[#allocation2 + $0x188] sm:$0xff]
    %v189 = vld [vmem:[#allocation2 + $0x190] sm:$0xff]
    %v190 = vld [vmem:[#allocation2 + $0x198] sm:$0xff]
    %v191 = vld [vmem:[#allocation2 + $0x1a0] sm:$0xff]
    %v192 = vld [vmem:[#allocation2 + $0x1a8] sm:$0xff]
    %v193 = vld [vmem:[#allocation2 + $0x1b0] sm:$0xff]
    %v194 = vld [vmem:[#allocation2 + $0x1b8] sm:$0xff]
    %v195 = vld [vmem:[#allocation2 + $0x1c0] sm:$0xff]
    %v196 = vld [vmem:[#allocation2 + $0x1c8] sm:$0xff]
    %v197 = vld [vmem:[#allocation2 + $0x1d0] sm:$0xff]
    %v198 = vld [vmem:[#allocation2 + $0x1d8] sm:$0xff]
    %v199 = vld [vmem:[#allocation2 + $0x1e0] sm:$0xff]
    %v200 = vld [vmem:[#allocation2 + $0x1e8] sm:$0xff]
    %v201 = vld [vmem:[#allocation2 + $0x1f0] sm:$0xff]
    %v202 = vld [vmem:[#allocation2 + $0x1f8] sm:$0xff]
    %v203 = vld [vmem:[#allocation2 + $0x200] sm:$0xff]
    %v204 = vld [vmem:[#allocation2 + $0x208] sm:$0xff]
    %v205 = vld [vmem:[#allocation2 + $0x210] sm:$0xff]
    %v206 = vld [vmem:[#allocation2 + $0x218] sm:$0xff]
    %v207 = vld [vmem:[#allocation2 + $0x220] sm:$0xff]
    %v208 = vld [vmem:[#allocation2 + $0x228] sm:$0xff]
    %v209 = vld [vmem:[#allocation2 + $0x230] sm:$0xff]
    %v210 = vld [vmem:[#allocation2 + $0x238] sm:$0xff]
    %v211 = vld [vmem:[#allocation2 + $0x240] sm:$0xff]
    %v212 = vld [vmem:[#allocation2 + $0x248] sm:$0xff]
    %v213 = vld [vmem:[#allocation2 + $0x250] sm:$0xff]
    %v214 = vld [vmem:[#allocation2 + $0x258] sm:$0xff]
    %v215 = vld [vmem:[#allocation2 + $0x260] sm:$0xff]
    %v216 = vld [vmem:[#allocation2 + $0x268] sm:$0xff]
    %v217 = vld [vmem:[#allocation2 + $0x270] sm:$0xff]
    %v218 = vld [vmem:[#allocation2 + $0x278] sm:$0xff]
    %v219 = vld [vmem:[#allocation2 + $0x280] sm:$0xff]
    %v220 = vld [vmem:[#allocation2 + $0x288] sm:$0xff]
    %v221 = vld [vmem:[#allocation2 + $0x290] sm:$0xff]
    %v222 = vld [vmem:[#allocation2 + $0x298] sm:$0xff]
    %v223 = vld [vmem:[#allocation2 + $0x2a0] sm:$0xff]
    %v224 = vld [vmem:[#allocation2 + $0x2a8] sm:$0xff]
    %v225 = vld [vmem:[#allocation2 + $0x2b0] sm:$0xff]
    %v226 = vld [vmem:[#allocation2 + $0x2b8] sm:$0xff]
    %v227 = vld [vmem:[#allocation2 + $0x2c0] sm:$0xff]
    %v228 = vld [vmem:[#allocation2 + $0x2c8] sm:$0xff]
    %v229 = vld [vmem:[#allocation2 + $0x2d0] sm:$0xff]
    %v230 = vld [vmem:[#allocation2 + $0x2d8] sm:$0xff]
    %v231 = vld [vmem:[#allocation2 + $0x2e0] sm:$0xff]
    %v232 = vld [vmem:[#allocation2 + $0x2e8] sm:$0xff]
    %v233 = vld [vmem:[#allocation2 + $0x2f0] sm:$0xff]
    %v234 = vld [vmem:[#allocation2 + $0x2f8] sm:$0xff]
    %v235 = vld [vmem:[#allocation2 + $0x300] sm:$0xff]
    %v236 = vld [vmem:[#allocation2 + $0x308] sm:$0xff]
    %v237 = vld [vmem:[#allocation2 + $0x310] sm:$0xff]
    %v238 = vld [vmem:[#allocation2 + $0x318] sm:$0xff]
    %v239 = vld [vmem:[#allocation2 + $0x320] sm:$0xff]
    %v240 = vld [vmem:[#allocation2 + $0x328] sm:$0xff]
    %v241 = vld [vmem:[#allocation2 + $0x330] sm:$0xff]
    %v242 = vld [vmem:[#allocation2 + $0x338] sm:$0xff]
    %v243 = vld [vmem:[#allocation2 + $0x340] sm:$0xff]
    %v244 = vld [vmem:[#allocation2 + $0x348] sm:$0xff]
    %v245 = vld [vmem:[#allocation2 + $0x350] sm:$0xff]
    %v246 = vld [vmem:[#allocation2 + $0x358] sm:$0xff]
    %v247 = vld [vmem:[#allocation2 + $0x360] sm:$0xff]
    %v248 = vld [vmem:[#allocation2 + $0x368] sm:$0xff]
    %v249 = vld [vmem:[#allocation2 + $0x370] sm:$0xff]
    %v250 = vld [vmem:[#allocation2 + $0x378] sm:$0xff]
    %v251 = vld [vmem:[#allocation2 + $0x380] sm:$0xff]
    %v252 = vld [vmem:[#allocation2 + $0x388] sm:$0xff]
    %v253 = vld [vmem:[#allocation2 + $0x390] sm:$0xff]
    %v254 = vld [vmem:[#allocation2 + $0x398] sm:$0xff]
    %v255 = vld [vmem:[#allocation2 + $0x3a0] sm:$0xff]
    %v256 = vld [vmem:[#allocation2 + $0x3a8] sm:$0xff]
    %v257 = vld [vmem:[#allocation2 + $0x3b0] sm:$0xff]
    %v258 = vld [vmem:[#allocation2 + $0x3b8] sm:$0xff]
    %v259 = vld [vmem:[#allocation2 + $0x3c0] sm:$0xff]
    %v260 = vld [vmem:[#allocation2 + $0x3c8] sm:$0xff]
    %v261 = vld [vmem:[#allocation2 + $0x3d0] sm:$0xff]
    %v262 = vld [vmem:[#allocation2 + $0x3d8] sm:$0xff]
    %v263 = vld [vmem:[#allocation2 + $0x3e0] sm:$0xff]
    %v264 = vld [vmem:[#allocation2 + $0x3e8] sm:$0xff]
    %v265 = vld [vmem:[#allocation2 + $0x3f0] sm:$0xff]
    %v266 = vld [vmem:[#allocation2 + $0x3f8] sm:$0xff]
    %v267 = vld [vmem:[#allocation2 + $0x400] sm:$0xff]
    %v268 = vld [vmem:[#allocation2 + $0x408] sm:$0xff]
    %v269 = vld [vmem:[#allocation2 + $0x410] sm:$0xff]
    %v270 = vld [vmem:[#allocation2 + $0x418] sm:$0xff]
    %v271 = vld [vmem:[#allocation2 + $0x420] sm:$0xff]
    %v272 = vld [vmem:[#allocation2 + $0x428] sm:$0xff]
    %v273 = vld [vmem:[#allocation2 + $0x430] sm:$0xff]
    %v274 = vld [vmem:[#allocation2 + $0x438] sm:$0xff]
    %v275 = vld [vmem:[#allocation2 + $0x440] sm:$0xff]
    %v276 = vld [vmem:[#allocation2 + $0x448] sm:$0xff]
    %v277 = vld [vmem:[#allocation2 + $0x450] sm:$0xff]
    %v278 = vld [vmem:[#allocation2 + $0x458] sm:$0xff]
    %v279 = vld [vmem:[#allocation2 + $0x460] sm:$0xff]
    %v280 = vld [vmem:[#allocation2 + $0x468] sm:$0xff]
    %v281 = vld [vmem:[#allocation2 + $0x470] sm:$0xff]
    %v282 = vld [vmem:[#allocation2 + $0x478] sm:$0xff]
    %v283 = vld [vmem:[#allocation2 + $0x480] sm:$0xff]
    %v284 = vld [vmem:[#allocation2 + $0x488] sm:$0xff]
    %v285 = vld [vmem:[#allocation2 + $0x490] sm:$0xff]
    %v286 = vld [vmem:[#allocation2 + $0x498] sm:$0xff]
    %v287 = vld [vmem:[#allocation2 + $0x4a0] sm:$0xff]
    %v288 = vld [vmem:[#allocation2 + $0x4a8] sm:$0xff]
    %v289 = vld [vmem:[#allocation2 + $0x4b0] sm:$0xff]
    %v290 = vld [vmem:[#allocation2 + $0x4b8] sm:$0xff]
    %v291 = vld [vmem:[#allocation2 + $0x4c0] sm:$0xff]
    %v292 = vld [vmem:[#allocation2 + $0x4c8] sm:$0xff]
    %v293 = vld [vmem:[#allocation2 + $0x4d0] sm:$0xff]
    %v294 = vld [vmem:[#allocation2 + $0x4d8] sm:$0xff]
    %v295 = vld [vmem:[#allocation2 + $0x4e0] sm:$0xff]
    %v296 = vld [vmem:[#allocation2 + $0x4e8] sm:$0xff]
    %v297 = vld [vmem:[#allocation2 + $0x4f0] sm:$0xff]
    %v298 = vld [vmem:[#allocation2 + $0x4f8] sm:$0xff]
    %v299 = vld [vmem:[#allocation2 + $0x500] sm:$0xff]
    %v300 = vld [vmem:[#allocation2 + $0x508] sm:$0xff]
    %v301 = vld [vmem:[#allocation2 + $0x510] sm:$0xff]
    %v302 = vld [vmem:[#allocation2 + $0x518] sm:$0xff]
    %v303 = vld [vmem:[#allocation2 + $0x520] sm:$0xff]
    %v304 = vld [vmem:[#allocation2 + $0x528] sm:$0xff]
    %v305 = vld [vmem:[#allocation2 + $0x530] sm:$0xff]
    %v306 = vld [vmem:[#allocation2 + $0x538] sm:$0xff]
    %v307 = vld [vmem:[#allocation2 + $0x540] sm:$0xff]
    %v308 = vld [vmem:[#allocation2 + $0x548] sm:$0xff]
    %v309 = vld [vmem:[#allocation2 + $0x550] sm:$0xff]
    %v310 = vld [vmem:[#allocation2 + $0x558] sm:$0xff]
    %v311 = vld [vmem:[#allocation2 + $0x560] sm:$0xff]
    %v312 = vld [vmem:[#allocation2 + $0x568] sm:$0xff]
    %v313 = vld [vmem:[#allocation2 + $0x570] sm:$0xff]
    %v314 = vld [vmem:[#allocation2 + $0x578] sm:$0xff]
    %v315 = vld [vmem:[#allocation2 + $0x580] sm:$0xff]
    %v316 = vld [vmem:[#allocation2 + $0x588] sm:$0xff]
    %v317 = vld [vmem:[#allocation2 + $0x590] sm:$0xff]
    %v318 = vld [vmem:[#allocation2 + $0x598] sm:$0xff]
    %v319 = vld [vmem:[#allocation2 + $0x5a0] sm:$0xff]
    %v320 = vld [vmem:[#allocation2 + $0x5a8] sm:$0xff]
    %v321 = vld [vmem:[#allocation2 + $0x5b0] sm:$0xff]
    %v322 = vld [vmem:[#allocation2 + $0x5b8] sm:$0xff]
    %v323 = vld [vmem:[#allocation2 + $0x5c0] sm:$0xff]
    %v324 = vld [vmem:[#allocation2 + $0x5c8] sm:$0xff]
    %v325 = vld [vmem:[#allocation2 + $0x5d0] sm:$0xff]
    %v326 = vld [vmem:[#allocation2 + $0x5d8] sm:$0xff]
    %v327 = vld [vmem:[#allocation2 + $0x5e0] sm:$0xff]
    %v328 = vld [vmem:[#allocation2 + $0x5e8] sm:$0xff]
    %v329 = vld [vmem:[#allocation2 + $0x5f0] sm:$0xff]
    %v330 = vld [vmem:[#allocation2 + $0x5f8] sm:$0xff]
    %v331 = vld [vmem:[#allocation2 + $0x600] sm:$0xff]
    %v332 = vld [vmem:[#allocation2 + $0x608] sm:$0xff]
    %v333 = vld [vmem:[#allocation2 + $0x610] sm:$0xff]
    %v334 = vld [vmem:[#allocation2 + $0x618] sm:$0xff]
    %v335 = vld [vmem:[#allocation2 + $0x620] sm:$0xff]
    %v336 = vld [vmem:[#allocation2 + $0x628] sm:$0xff]
    %v337 = vld [vmem:[#allocation2 + $0x630] sm:$0xff]
    %v338 = vld [vmem:[#allocation2 + $0x638] sm:$0xff]
    %v339 = vld [vmem:[#allocation2 + $0x640] sm:$0xff]
    %v340 = vld [vmem:[#allocation2 + $0x648] sm:$0xff]
    %v341 = vld [vmem:[#allocation2 + $0x650] sm:$0xff]
    %v342 = vld [vmem:[#allocation2 + $0x658] sm:$0xff]
    %v343 = vld [vmem:[#allocation2 + $0x660] sm:$0xff]
    %v344 = vld [vmem:[#allocation2 + $0x668] sm:$0xff]
    %v345 = vld [vmem:[#allocation2 + $0x670] sm:$0xff]
    %v346 = vld [vmem:[#allocation2 + $0x678] sm:$0xff]
    %v347 = vld [vmem:[#allocation2 + $0x680] sm:$0xff]
    %v348 = vld [vmem:[#allocation2 + $0x688] sm:$0xff]
    %v349 = vld [vmem:[#allocation2 + $0x690] sm:$0xff]
    %v350 = vld [vmem:[#allocation2 + $0x698] sm:$0xff]
    %v351 = vld [vmem:[#allocation2 + $0x6a0] sm:$0xff]
    %v352 = vld [vmem:[#allocation2 + $0x6a8] sm:$0xff]
    %v353 = vld [vmem:[#allocation2 + $0x6b0] sm:$0xff]
    %v354 = vld [vmem:[#allocation2 + $0x6b8] sm:$0xff]
    %v355 = vld [vmem:[#allocation2 + $0x6c0] sm:$0xff]
    %v356 = vld [vmem:[#allocation2 + $0x6c8] sm:$0xff]
    %v357 = vld [vmem:[#allocation2 + $0x6d0] sm:$0xff]
    %v358 = vld [vmem:[#allocation2 + $0x6d8] sm:$0xff]
    %v359 = vld [vmem:[#allocation2 + $0x6e0] sm:$0xff]
    %v360 = vld [vmem:[#allocation2 + $0x6e8] sm:$0xff]
    %v361 = vld [vmem:[#allocation2 + $0x6f0] sm:$0xff]
    %v362 = vld [vmem:[#allocation2 + $0x6f8] sm:$0xff]
    %v363 = vld [vmem:[#allocation2 + $0x700] sm:$0xff]
    %v364 = vld [vmem:[#allocation2 + $0x708] sm:$0xff]
    %v365 = vld [vmem:[#allocation2 + $0x710] sm:$0xff]
    %v366 = vld [vmem:[#allocation2 + $0x718] sm:$0xff]
    %v367 = vld [vmem:[#allocation2 + $0x720] sm:$0xff]
    %v368 = vld [vmem:[#allocation2 + $0x728] sm:$0xff]
    %v369 = vld [vmem:[#allocation2 + $0x730] sm:$0xff]
    %v370 = vld [vmem:[#allocation2 + $0x738] sm:$0xff]
    %v371 = vld [vmem:[#allocation2 + $0x740] sm:$0xff]
    %v372 = vld [vmem:[#allocation2 + $0x748] sm:$0xff]
    %v373 = vld [vmem:[#allocation2 + $0x750] sm:$0xff]
    %v374 = vld [vmem:[#allocation2 + $0x758] sm:$0xff]
    %v375 = vld [vmem:[#allocation2 + $0x760] sm:$0xff]
    %v376 = vld [vmem:[#allocation2 + $0x768] sm:$0xff]
    %v377 = vld [vmem:[#allocation2 + $0x770] sm:$0xff]
    %v378 = vld [vmem:[#allocation2 + $0x778] sm:$0xff]
    %v379 = vld [vmem:[#allocation2 + $0x780] sm:$0xff]
    %v380 = vld [vmem:[#allocation2 + $0x788] sm:$0xff]
    %v381 = vld [vmem:[#allocation2 + $0x790] sm:$0xff]
    %v382 = vld [vmem:[#allocation2 + $0x798] sm:$0xff]
    %v383 = vld [vmem:[#allocation2 + $0x7a0] sm:$0xff]
    %v384 = vld [vmem:[#allocation2 + $0x7a8] sm:$0xff]
    %v385 = vld [vmem:[#allocation2 + $0x7b0] sm:$0xff]
    %v386 = vld [vmem:[#allocation2 + $0x7b8] sm:$0xff]
    %v387 = vld [vmem:[#allocation2 + $0x7c0] sm:$0xff]
    %v388 = vld [vmem:[#allocation2 + $0x7c8] sm:$0xff]
    %v389 = vld [vmem:[#allocation2 + $0x7d0] sm:$0xff]
    %v390 = vld [vmem:[#allocation2 + $0x7d8] sm:$0xff]
    %v391 = vld [vmem:[#allocation2 + $0x7e0] sm:$0xff]
    %v392 = vld [vmem:[#allocation2 + $0x7e8] sm:$0xff]
    %v393 = vld [vmem:[#allocation2 + $0x7f0] sm:$0xff]
    %v394 = vld [vmem:[#allocation2 + $0x7f8] sm:$0xff]
    %v395 = vld [vmem:[#allocation2 + $0x800] sm:$0xff]
    %v396 = vld [vmem:[#allocation2 + $0x808] sm:$0xff]
    %v397 = vld [vmem:[#allocation2 + $0x810] sm:$0xff]
    %v398 = vld [vmem:[#allocation2 + $0x818] sm:$0xff]
    %v399 = vld [vmem:[#allocation2 + $0x820] sm:$0xff]
    %v400 = vld [vmem:[#allocation2 + $0x828] sm:$0xff]
    %v401 = vld [vmem:[#allocation2 + $0x830] sm:$0xff]
    %v402 = vld [vmem:[#allocation2 + $0x838] sm:$0xff]
    %v403 = vld [vmem:[#allocation2 + $0x840] sm:$0xff]
    %v404 = vld [vmem:[#allocation2 + $0x848] sm:$0xff]
    %v405 = vld [vmem:[#allocation2 + $0x850] sm:$0xff]
    %v406 = vld [vmem:[#allocation2 + $0x858] sm:$0xff]
    %v407 = vld [vmem:[#allocation2 + $0x860] sm:$0xff]
    %v408 = vld [vmem:[#allocation2 + $0x868] sm:$0xff]
    %v409 = vld [vmem:[#allocation2 + $0x870] sm:$0xff]
    %v410 = vld [vmem:[#allocation2 + $0x878] sm:$0xff]
    %v411 = vld [vmem:[#allocation2 + $0x880] sm:$0xff]
    %v412 = vld [vmem:[#allocation2 + $0x888] sm:$0xff]
    %v413 = vld [vmem:[#allocation2 + $0x890] sm:$0xff]
    %v414 = vld [vmem:[#allocation2 + $0x898] sm:$0xff]
    %v415 = vld [vmem:[#allocation2 + $0x8a0] sm:$0xff]
    %v416 = vld [vmem:[#allocation2 + $0x8a8] sm:$0xff]
    %v417 = vld [vmem:[#allocation2 + $0x8b0] sm:$0xff]
    %v418 = vld [vmem:[#allocation2 + $0x8b8] sm:$0xff]
    %v419 = vld [vmem:[#allocation2 + $0x8c0] sm:$0xff]
    %v420 = vld [vmem:[#allocation2 + $0x8c8] sm:$0xff]
    %v421 = vld [vmem:[#allocation2 + $0x8d0] sm:$0xff]
    %v422 = vld [vmem:[#allocation2 + $0x8d8] sm:$0xff]
    %v423 = vld [vmem:[#allocation2 + $0x8e0] sm:$0xff]
    %v424 = vld [vmem:[#allocation2 + $0x8e8] sm:$0xff]
    %v425 = vld [vmem:[#allocation2 + $0x8f0] sm:$0xff]
    %v426 = vld [vmem:[#allocation2 + $0x8f8] sm:$0xff]
    %v427 = vld [vmem:[#allocation5] sm:$0xff]
    %v428 = vld [vmem:[#allocation5 + $0x8] sm:$0x1]
    %v431 = vlaneseq
    %v432 = vshrl.u32 %v431, 7
    %v433 = vsub.s32 0, %v432
    %v434 = vrot.slane %v427, %v433
    %v435 = vlaneseq
    %v436 = vshrl.u32 %v435, 7
    %v437 = vsub.s32 1, %v436
    %v438 = vrot.slane %v427, %v437
    %v439 = vlaneseq
    %v440 = vshrl.u32 %v439, 7
    %v441 = vsub.s32 2, %v440
    %v442 = vrot.slane %v427, %v441
    %v443 = vlaneseq
    %v444 = vshrl.u32 %v443, 7
    %v445 = vsub.s32 3, %v444
    %v446 = vrot.slane %v427, %v445
    %v447 = vlaneseq
    %v448 = vshrl.u32 %v447, 7
    %v449 = vsub.s32 4, %v448
    %v450 = vrot.slane %v427, %v449
    %v451 = vlaneseq
    %v452 = vshrl.u32 %v451, 7
    %v453 = vsub.s32 5, %v452
    %v454 = vrot.slane %v427, %v453
    %v455 = vlaneseq
    %v456 = vshrl.u32 %v455, 7
    %v457 = vsub.s32 6, %v456
    %v458 = vrot.slane %v427, %v457
    %v459 = vlaneseq
    %v460 = vshrl.u32 %v459, 7
    %v461 = vsub.s32 7, %v460
    %v462 = vrot.slane %v427, %v461
    %v463 = vlaneseq
    %v464 = vshrl.u32 %v463, 7
    %v465 = vsub.s32 0, %v464
    %v466 = vrot.slane %v428, %v465
    %v478 = vunpack.c.l.s4 1983009808
    %v479 = vunpack.c.0.s8 %v478
    %v480 = vlaneseq
    %v481 = vshrl.u32 %v480, 7
    %v482 = vsub.s32 %v479, %v481
    %v483 = vrot.slane %v138, %v482
    %v484 = vcombine.high %v483, %v483
    %487 = vmatprep.subr.mxu0 %v275
    %488 = vmatpush1.msra.mxu0 %v274
    %489 = vmatprep.subr.mxu0 %v266
    %490 = vmatpush1.msra.mxu0 %v265
    %491 = vmatprep.subr.mxu0 %v257
    %492 = vmatpush1.msra.mxu0 %v256
    %493 = vmatprep.subr.mxu0 %v248
    %494 = vmatpush1.msra.mxu0 %v247
    %495 = vmatprep.subr.mxu0 %v239
    %496 = vmatpush1.msra.mxu0 %v238
    %497 = vmatprep.subr.mxu0 %v230
    %498 = vmatpush1.msra.mxu0 %v229
    %499 = vmatprep.subr.mxu0 %v221
    %500 = vmatpush1.msra.mxu0 %v220
    %501 = vmatprep.subr.mxu0 %v212
    %502 = vmatpush1.msra.mxu0 %v211
    %503 = vmatprep.subr.mxu0 %v203
    %504 = vmatpush1.msra.mxu0 %v202
    %505 = vmatprep.subr.mxu0 %v194
    %506 = vmatpush1.msra.mxu0 %v193
    %507 = vmatprep.subr.mxu0 %v185
    %508 = vmatpush1.msra.mxu0 %v184
    %509 = vmatprep.subr.mxu0 %v176
    %510 = vmatpush1.msra.mxu0 %v175
    %511 = vmatprep.subr.mxu0 %v167
    %512 = vmatpush1.msra.mxu0 %v166
    %513 = vmatprep.subr.mxu0 %v158
    %514 = vmatpush1.msra.mxu0 %v157
    %515 = vmatprep.subr.mxu0 %v149
    %516 = vmatpush1.msra.mxu0 %v148
    %517 = vmatprep.subr.mxu0 %v140
    %518 = vmatpush1.msra.mxu0 %v139
    %519 = vmatprep.subr.mxu0 %v419
    %520 = vmatpush2.msra.mxu0 %v418
    %521 = vmatprep.subr.mxu0 %v410
    %522 = vmatpush2.msra.mxu0 %v409
    %523 = vmatprep.subr.mxu0 %v401
    %524 = vmatpush2.msra.mxu0 %v400
    %525 = vmatprep.subr.mxu0 %v392
    %526 = vmatpush2.msra.mxu0 %v391
    %527 = vmatprep.subr.mxu0 %v383
    %528 = vmatpush2.msra.mxu0 %v382
    %529 = vmatprep.subr.mxu0 %v374
    %530 = vmatpush2.msra.mxu0 %v373
    %531 = vmatprep.subr.mxu0 %v365
    %532 = vmatpush2.msra.mxu0 %v364
    %533 = vmatprep.subr.mxu0 %v356
    %534 = vmatpush2.msra.mxu0 %v355
    %535 = vmatprep.subr.mxu0 %v347
    %536 = vmatpush2.msra.mxu0 %v346
    %537 = vmatprep.subr.mxu0 %v338
    %538 = vmatpush2.msra.mxu0 %v337
    %539 = vmatprep.subr.mxu0 %v329
    %540 = vmatpush2.msra.mxu0 %v328
    %541 = vmatprep.subr.mxu0 %v320
    %542 = vmatpush2.msra.mxu0 %v319
    %543 = vmatprep.subr.mxu0 %v311
    %544 = vmatpush2.msra.mxu0 %v310
    %545 = vmatprep.subr.mxu0 %v302
    %546 = vmatpush2.msra.mxu0 %v301
    %547 = vmatprep.subr.mxu0 %v293
    %548 = vmatpush2.msra.mxu0 %v292
    %549 = vmatprep.subr.mxu0 %v284
    %550 = vmatpush2.msra.mxu0 %v283
    %551 = vmatprep.mubr.f32.mxu0 %v484
    %552 = vmatmul.mubr.f32.gmra.mxu0 %v483
    %v553 = vpop.f32.mrf.mxu0
    %v554 = vadd.f32 %v434, %v553
    %v555 = vpop.f32.mrf.mxu0
    %v556 = vadd.f32 %v438, %v555
    %557 = vdwg.mxu0
    %558 = vmatprep.subr.mxu0 %v277
    %559 = vmatpush1.msra.mxu0 %v276
    %560 = vmatprep.subr.mxu0 %v268
    %561 = vmatpush1.msra.mxu0 %v267
    %562 = vmatprep.subr.mxu0 %v259
    %563 = vmatpush1.msra.mxu0 %v258
    %564 = vmatprep.subr.mxu0 %v250
    %565 = vmatpush1.msra.mxu0 %v249
    %566 = vmatprep.subr.mxu0 %v241
    %567 = vmatpush1.msra.mxu0 %v240
    %568 = vmatprep.subr.mxu0 %v232
    %569 = vmatpush1.msra.mxu0 %v231
    %570 = vmatprep.subr.mxu0 %v223
    %571 = vmatpush1.msra.mxu0 %v222
    %572 = vmatprep.subr.mxu0 %v214
    %573 = vmatpush1.msra.mxu0 %v213
    %574 = vmatprep.subr.mxu0 %v205
    %575 = vmatpush1.msra.mxu0 %v204
    %576 = vmatprep.subr.mxu0 %v196
    %577 = vmatpush1.msra.mxu0 %v195
    %578 = vmatprep.subr.mxu0 %v187
    %579 = vmatpush1.msra.mxu0 %v186
    %580 = vmatprep.subr.mxu0 %v178
    %581 = vmatpush1.msra.mxu0 %v177
    %582 = vmatprep.subr.mxu0 %v169
    %583 = vmatpush1.msra.mxu0 %v168
    %584 = vmatprep.subr.mxu0 %v160
    %585 = vmatpush1.msra.mxu0 %v159
    %586 = vmatprep.subr.mxu0 %v151
    %587 = vmatpush1.msra.mxu0 %v150
    %588 = vmatprep.subr.mxu0 %v142
    %589 = vmatpush1.msra.mxu0 %v141
    %590 = vmatprep.subr.mxu0 %v421
    %591 = vmatpush2.msra.mxu0 %v420
    %592 = vmatprep.subr.mxu0 %v412
    %593 = vmatpush2.msra.mxu0 %v411
    %594 = vmatprep.subr.mxu0 %v403
    %595 = vmatpush2.msra.mxu0 %v402
    %596 = vmatprep.subr.mxu0 %v394
    %597 = vmatpush2.msra.mxu0 %v393
    %598 = vmatprep.subr.mxu0 %v385
    %599 = vmatpush2.msra.mxu0 %v384
    %600 = vmatprep.subr.mxu0 %v376
    %601 = vmatpush2.msra.mxu0 %v375
    %602 = vmatprep.subr.mxu0 %v367
    %603 = vmatpush2.msra.mxu0 %v366
    %604 = vmatprep.subr.mxu0 %v358
    %605 = vmatpush2.msra.mxu0 %v357
    %606 = vmatprep.subr.mxu0 %v349
    %607 = vmatpush2.msra.mxu0 %v348
    %608 = vmatprep.subr.mxu0 %v340
    %609 = vmatpush2.msra.mxu0 %v339
    %610 = vmatprep.subr.mxu0 %v331
    %611 = vmatpush2.msra.mxu0 %v330
    %612 = vmatprep.subr.mxu0 %v322
    %613 = vmatpush2.msra.mxu0 %v321
    %614 = vmatprep.subr.mxu0 %v313
    %615 = vmatpush2.msra.mxu0 %v312
    %616 = vmatprep.subr.mxu0 %v304
    %617 = vmatpush2.msra.mxu0 %v303
    %618 = vmatprep.subr.mxu0 %v295
    %619 = vmatpush2.msra.mxu0 %v294
    %620 = vmatprep.subr.mxu0 %v286
    %621 = vmatpush2.msra.mxu0 %v285
    %622 = vmatprep.mubr.f32.mxu0 %v484
    %623 = vmatmul.mubr.f32.gmra.mxu0 %v483
    %v624 = vpop.f32.mrf.mxu0
    %v625 = vadd.f32 %v442, %v624
    %v626 = vpop.f32.mrf.mxu0
    %v627 = vadd.f32 %v446, %v626
    %628 = vdwg.mxu0
    %629 = vmatprep.subr.mxu0 %v279
    %630 = vmatpush1.msra.mxu0 %v278
    %631 = vmatprep.subr.mxu0 %v270
    %632 = vmatpush1.msra.mxu0 %v269
    %633 = vmatprep.subr.mxu0 %v261
    %634 = vmatpush1.msra.mxu0 %v260
    %635 = vmatprep.subr.mxu0 %v252
    %636 = vmatpush1.msra.mxu0 %v251
    %637 = vmatprep.subr.mxu0 %v243
    %638 = vmatpush1.msra.mxu0 %v242
    %639 = vmatprep.subr.mxu0 %v234
    %640 = vmatpush1.msra.mxu0 %v233
    %641 = vmatprep.subr.mxu0 %v225
    %642 = vmatpush1.msra.mxu0 %v224
    %643 = vmatprep.subr.mxu0 %v216
    %644 = vmatpush1.msra.mxu0 %v215
    %645 = vmatprep.subr.mxu0 %v207
    %646 = vmatpush1.msra.mxu0 %v206
    %647 = vmatprep.subr.mxu0 %v198
    %648 = vmatpush1.msra.mxu0 %v197
    %649 = vmatprep.subr.mxu0 %v189
    %650 = vmatpush1.msra.mxu0 %v188
    %651 = vmatprep.subr.mxu0 %v180
    %652 = vmatpush1.msra.mxu0 %v179
    %653 = vmatprep.subr.mxu0 %v171
    %654 = vmatpush1.msra.mxu0 %v170
    %655 = vmatprep.subr.mxu0 %v162
    %656 = vmatpush1.msra.mxu0 %v161
    %657 = vmatprep.subr.mxu0 %v153
    %658 = vmatpush1.msra.mxu0 %v152
    %659 = vmatprep.subr.mxu0 %v144
    %660 = vmatpush1.msra.mxu0 %v143
    %661 = vmatprep.subr.mxu0 %v423
    %662 = vmatpush2.msra.mxu0 %v422
    %663 = vmatprep.subr.mxu0 %v414
    %664 = vmatpush2.msra.mxu0 %v413
    %665 = vmatprep.subr.mxu0 %v405
    %666 = vmatpush2.msra.mxu0 %v404
    %667 = vmatprep.subr.mxu0 %v396
    %668 = vmatpush2.msra.mxu0 %v395
    %669 = vmatprep.subr.mxu0 %v387
    %670 = vmatpush2.msra.mxu0 %v386
    %671 = vmatprep.subr.mxu0 %v378
    %672 = vmatpush2.msra.mxu0 %v377
    %673 = vmatprep.subr.mxu0 %v369
    %674 = vmatpush2.msra.mxu0 %v368
    %675 = vmatprep.subr.mxu0 %v360
    %676 = vmatpush2.msra.mxu0 %v359
    %677 = vmatprep.subr.mxu0 %v351
    %678 = vmatpush2.msra.mxu0 %v350
    %679 = vmatprep.subr.mxu0 %v342
    %680 = vmatpush2.msra.mxu0 %v341
    %681 = vmatprep.subr.mxu0 %v333
    %682 = vmatpush2.msra.mxu0 %v332
    %683 = vmatprep.subr.mxu0 %v324
    %684 = vmatpush2.msra.mxu0 %v323
    %685 = vmatprep.subr.mxu0 %v315
    %686 = vmatpush2.msra.mxu0 %v314
    %687 = vmatprep.subr.mxu0 %v306
    %688 = vmatpush2.msra.mxu0 %v305
    %689 = vmatprep.subr.mxu0 %v297
    %690 = vmatpush2.msra.mxu0 %v296
    %691 = vmatprep.subr.mxu0 %v288
    %692 = vmatpush2.msra.mxu0 %v287
    %693 = vmatprep.mubr.f32.mxu0 %v484
    %694 = vmatmul.mubr.f32.gmra.mxu0 %v483
    %v695 = vpop.f32.mrf.mxu0
    %v696 = vadd.f32 %v450, %v695
    %v697 = vpop.f32.mrf.mxu0
    %v698 = vadd.f32 %v454, %v697
    %699 = vdwg.mxu0
    %700 = vmatprep.subr.mxu0 %v281
    %701 = vmatpush1.msra.mxu0 %v280
    %702 = vmatprep.subr.mxu0 %v272
    %703 = vmatpush1.msra.mxu0 %v271
    %704 = vmatprep.subr.mxu0 %v263
    %705 = vmatpush1.msra.mxu0 %v262
    %706 = vmatprep.subr.mxu0 %v254
    %707 = vmatpush1.msra.mxu0 %v253
    %708 = vmatprep.subr.mxu0 %v245
    %709 = vmatpush1.msra.mxu0 %v244
    %710 = vmatprep.subr.mxu0 %v236
    %711 = vmatpush1.msra.mxu0 %v235
    %712 = vmatprep.subr.mxu0 %v227
    %713 = vmatpush1.msra.mxu0 %v226
    %714 = vmatprep.subr.mxu0 %v218
    %715 = vmatpush1.msra.mxu0 %v217
    %716 = vmatprep.subr.mxu0 %v209
    %717 = vmatpush1.msra.mxu0 %v208
    %718 = vmatprep.subr.mxu0 %v200
    %719 = vmatpush1.msra.mxu0 %v199
    %720 = vmatprep.subr.mxu0 %v191
    %721 = vmatpush1.msra.mxu0 %v190
    %722 = vmatprep.subr.mxu0 %v182
    %723 = vmatpush1.msra.mxu0 %v181
    %724 = vmatprep.subr.mxu0 %v173
    %725 = vmatpush1.msra.mxu0 %v172
    %726 = vmatprep.subr.mxu0 %v164
    %727 = vmatpush1.msra.mxu0 %v163
    %728 = vmatprep.subr.mxu0 %v155
    %729 = vmatpush1.msra.mxu0 %v154
    %730 = vmatprep.subr.mxu0 %v146
    %731 = vmatpush1.msra.mxu0 %v145
    %732 = vmatprep.subr.mxu0 %v425
    %733 = vmatpush2.msra.mxu0 %v424
    %734 = vmatprep.subr.mxu0 %v416
    %735 = vmatpush2.msra.mxu0 %v415
    %736 = vmatprep.subr.mxu0 %v407
    %737 = vmatpush2.msra.mxu0 %v406
    %738 = vmatprep.subr.mxu0 %v398
    %739 = vmatpush2.msra.mxu0 %v397
    %740 = vmatprep.subr.mxu0 %v389
    %741 = vmatpush2.msra.mxu0 %v388
    %742 = vmatprep.subr.mxu0 %v380
    %743 = vmatpush2.msra.mxu0 %v379
    %744 = vmatprep.subr.mxu0 %v371
    %745 = vmatpush2.msra.mxu0 %v370
    %746 = vmatprep.subr.mxu0 %v362
    %747 = vmatpush2.msra.mxu0 %v361
    %748 = vmatprep.subr.mxu0 %v353
    %749 = vmatpush2.msra.mxu0 %v352
    %750 = vmatprep.subr.mxu0 %v344
    %751 = vmatpush2.msra.mxu0 %v343
    %752 = vmatprep.subr.mxu0 %v335
    %753 = vmatpush2.msra.mxu0 %v334
    %754 = vmatprep.subr.mxu0 %v326
    %755 = vmatpush2.msra.mxu0 %v325
    %756 = vmatprep.subr.mxu0 %v317
    %757 = vmatpush2.msra.mxu0 %v316
    %758 = vmatprep.subr.mxu0 %v308
    %759 = vmatpush2.msra.mxu0 %v307
    %760 = vmatprep.subr.mxu0 %v299
    %761 = vmatpush2.msra.mxu0 %v298
    %762 = vmatprep.subr.mxu0 %v290
    %763 = vmatpush2.msra.mxu0 %v289
    %764 = vmatprep.mubr.f32.mxu0 %v484
    %765 = vmatmul.mubr.f32.gmra.mxu0 %v483
    %v766 = vpop.f32.mrf.mxu0
    %v767 = vadd.f32 %v458, %v766
    %v768 = vpop.f32.mrf.mxu0
    %v769 = vadd.f32 %v462, %v768
    %770 = vdwg.mxu0
    %771 = vmatprep.subr.mxu0 0.0
    %772 = vmatpush1.msra.mxu0 %v282
    %773 = vmatprep.subr.mxu0 0.0
    %774 = vmatpush1.msra.mxu0 %v273
    %775 = vmatprep.subr.mxu0 0.0
    %776 = vmatpush1.msra.mxu0 %v264
    %777 = vmatprep.subr.mxu0 0.0
    %778 = vmatpush1.msra.mxu0 %v255
    %779 = vmatprep.subr.mxu0 0.0
    %780 = vmatpush1.msra.mxu0 %v246
    %781 = vmatprep.subr.mxu0 0.0
    %782 = vmatpush1.msra.mxu0 %v237
    %783 = vmatprep.subr.mxu0 0.0
    %784 = vmatpush1.msra.mxu0 %v228
    %785 = vmatprep.subr.mxu0 0.0
    %786 = vmatpush1.msra.mxu0 %v219
    %787 = vmatprep.subr.mxu0 0.0
    %788 = vmatpush1.msra.mxu0 %v210
    %789 = vmatprep.subr.mxu0 0.0
    %790 = vmatpush1.msra.mxu0 %v201
    %791 = vmatprep.subr.mxu0 0.0
    %792 = vmatpush1.msra.mxu0 %v192
    %793 = vmatprep.subr.mxu0 0.0
    %794 = vmatpush1.msra.mxu0 %v183
    %795 = vmatprep.subr.mxu0 0.0
    %796 = vmatpush1.msra.mxu0 %v174
    %797 = vmatprep.subr.mxu0 0.0
    %798 = vmatpush1.msra.mxu0 %v165
    %799 = vmatprep.subr.mxu0 0.0
    %800 = vmatpush1.msra.mxu0 %v156
    %801 = vmatprep.subr.mxu0 0.0
    %802 = vmatpush1.msra.mxu0 %v147
    %803 = vmatprep.subr.mxu0 0.0
    %804 = vmatpush2.msra.mxu0 %v426
    %805 = vmatprep.subr.mxu0 0.0
    %806 = vmatpush2.msra.mxu0 %v417
    %807 = vmatprep.subr.mxu0 0.0
    %808 = vmatpush2.msra.mxu0 %v408
    %809 = vmatprep.subr.mxu0 0.0
    %810 = vmatpush2.msra.mxu0 %v399
    %811 = vmatprep.subr.mxu0 0.0
    %812 = vmatpush2.msra.mxu0 %v390
    %813 = vmatprep.subr.mxu0 0.0
    %814 = vmatpush2.msra.mxu0 %v381
    %815 = vmatprep.subr.mxu0 0.0
    %816 = vmatpush2.msra.mxu0 %v372
    %817 = vmatprep.subr.mxu0 0.0
    %818 = vmatpush2.msra.mxu0 %v363
    %819 = vmatprep.subr.mxu0 0.0
    %820 = vmatpush2.msra.mxu0 %v354
    %821 = vmatprep.subr.mxu0 0.0
    %822 = vmatpush2.msra.mxu0 %v345
    %823 = vmatprep.subr.mxu0 0.0
    %824 = vmatpush2.msra.mxu0 %v336
    %825 = vmatprep.subr.mxu0 0.0
    %826 = vmatpush2.msra.mxu0 %v327
    %827 = vmatprep.subr.mxu0 0.0
    %828 = vmatpush2.msra.mxu0 %v318
    %829 = vmatprep.subr.mxu0 0.0
    %830 = vmatpush2.msra.mxu0 %v309
    %831 = vmatprep.subr.mxu0 0.0
    %832 = vmatpush2.msra.mxu0 %v300
    %833 = vmatprep.subr.mxu0 0.0
    %834 = vmatpush2.msra.mxu0 %v291
    %835 = vmatprep.mubr.f32.mxu0 %v484
    %836 = vmatmul.mubr.f32.gmra.mxu0 %v483
    %v837 = vpop.f32.mrf.mxu0
    %v838 = vadd.f32 %v466, %v837
    %v839 = vpop.f32.mrf.mxu0
    %840 = vdwg.mxu0
    %v841 = vmax.f32 %v554, 0.0
    %v842 = vmax.f32 %v556, 0.0
    %v843 = vmax.f32 %v625, 0.0
    %v844 = vmax.f32 %v627, 0.0
    %v845 = vmax.f32 %v696, 0.0
    %v846 = vmax.f32 %v698, 0.0
    %v847 = vmax.f32 %v767, 0.0
    %v848 = vmax.f32 %v769, 0.0
    %v849 = vmax.f32 %v838, 0.0
    %v850 = vld [vmem:[#allocation7] sm:$0xff]
    %v851 = vld [vmem:[#allocation7 + $0x8] sm:$0xff]
    %v852 = vld [vmem:[#allocation7 + $0x10] sm:$0xff]
    %v853 = vld [vmem:[#allocation7 + $0x18] sm:$0xff]
    %v854 = vld [vmem:[#allocation7 + $0x20] sm:$0xff]
    %v855 = vld [vmem:[#allocation7 + $0x28] sm:$0xff]
    %v856 = vld [vmem:[#allocation7 + $0x30] sm:$0xff]
    %v857 = vld [vmem:[#allocation7 + $0x38] sm:$0xff]
    %v858 = vld [vmem:[#allocation7 + $0x40] sm:$0xff]
    %v859 = vld [vmem:[#allocation7 + $0x48] sm:$0xff]
    %v860 = vld [vmem:[#allocation7 + $0x50] sm:$0xff]
    %v861 = vld [vmem:[#allocation7 + $0x58] sm:$0xff]
    %v862 = vld [vmem:[#allocation7 + $0x60] sm:$0xff]
    %v863 = vld [vmem:[#allocation7 + $0x68] sm:$0xff]
    %v864 = vld [vmem:[#allocation7 + $0x70] sm:$0xff]
    %v865 = vld [vmem:[#allocation7 + $0x78] sm:$0xff]
    %v866 = vld [vmem:[#allocation7 + $0x80] sm:$0xff]
    %v867 = vld [vmem:[#allocation7 + $0x88] sm:$0xff]
    %v868 = vld [vmem:[#allocation7 + $0x90] sm:$0xff]
    %v869 = vld [vmem:[#allocation7 + $0x98] sm:$0xff]
    %v870 = vld [vmem:[#allocation7 + $0xa0] sm:$0xff]
    %v871 = vld [vmem:[#allocation7 + $0xa8] sm:$0xff]
    %v872 = vld [vmem:[#allocation7 + $0xb0] sm:$0xff]
    %v873 = vld [vmem:[#allocation7 + $0xb8] sm:$0xff]
    %v874 = vld [vmem:[#allocation7 + $0xc0] sm:$0xff]
    %v875 = vld [vmem:[#allocation7 + $0xc8] sm:$0xff]
    %v876 = vld [vmem:[#allocation7 + $0xd0] sm:$0xff]
    %v877 = vld [vmem:[#allocation7 + $0xd8] sm:$0xff]
    %v878 = vld [vmem:[#allocation7 + $0xe0] sm:$0xff]
    %v879 = vld [vmem:[#allocation7 + $0xe8] sm:$0xff]
    %v880 = vld [vmem:[#allocation7 + $0xf0] sm:$0xff]
    %v881 = vld [vmem:[#allocation7 + $0xf8] sm:$0xff]
    %v882 = vld [vmem:[#allocation7 + $0x100] sm:$0xff]
    %v883 = vld [vmem:[#allocation7 + $0x108] sm:$0xff]
    %v884 = vld [vmem:[#allocation7 + $0x110] sm:$0xff]
    %v885 = vld [vmem:[#allocation7 + $0x118] sm:$0xff]
    %v886 = vld [vmem:[#allocation7 + $0x120] sm:$0xff]
    %v887 = vld [vmem:[#allocation7 + $0x128] sm:$0xff]
    %v888 = vld [vmem:[#allocation7 + $0x130] sm:$0xff]
    %v889 = vld [vmem:[#allocation7 + $0x138] sm:$0xff]
    %v890 = vld [vmem:[#allocation7 + $0x140] sm:$0xff]
    %v891 = vld [vmem:[#allocation7 + $0x148] sm:$0xff]
    %v892 = vld [vmem:[#allocation7 + $0x150] sm:$0xff]
    %v893 = vld [vmem:[#allocation7 + $0x158] sm:$0xff]
    %v894 = vld [vmem:[#allocation7 + $0x160] sm:$0xff]
    %v895 = vld [vmem:[#allocation7 + $0x168] sm:$0xff]
    %v896 = vld [vmem:[#allocation7 + $0x170] sm:$0xff]
    %v897 = vld [vmem:[#allocation7 + $0x178] sm:$0xff]
    %v898 = vld [vmem:[#allocation7 + $0x180] sm:$0xff]
    %v899 = vld [vmem:[#allocation7 + $0x188] sm:$0xff]
    %v900 = vld [vmem:[#allocation7 + $0x190] sm:$0xff]
    %v901 = vld [vmem:[#allocation7 + $0x198] sm:$0xff]
    %v902 = vld [vmem:[#allocation7 + $0x1a0] sm:$0xff]
    %v903 = vld [vmem:[#allocation7 + $0x1a8] sm:$0xff]
    %v904 = vld [vmem:[#allocation7 + $0x1b0] sm:$0xff]
    %v905 = vld [vmem:[#allocation7 + $0x1b8] sm:$0xff]
    %v906 = vld [vmem:[#allocation7 + $0x1c0] sm:$0xff]
    %v907 = vld [vmem:[#allocation7 + $0x1c8] sm:$0xff]
    %v908 = vld [vmem:[#allocation7 + $0x1d0] sm:$0xff]
    %v909 = vld [vmem:[#allocation7 + $0x1d8] sm:$0xff]
    %v910 = vld [vmem:[#allocation7 + $0x1e0] sm:$0xff]
    %v911 = vld [vmem:[#allocation7 + $0x1e8] sm:$0xff]
    %v912 = vld [vmem:[#allocation7 + $0x1f0] sm:$0xff]
    %v913 = vld [vmem:[#allocation7 + $0x1f8] sm:$0xff]
    %v914 = vld [vmem:[#allocation7 + $0x200] sm:$0xff]
    %v915 = vld [vmem:[#allocation7 + $0x208] sm:$0xff]
    %v916 = vld [vmem:[#allocation7 + $0x210] sm:$0xff]
    %v917 = vld [vmem:[#allocation7 + $0x218] sm:$0xff]
    %v918 = vld [vmem:[#allocation7 + $0x220] sm:$0xff]
    %v919 = vld [vmem:[#allocation7 + $0x228] sm:$0xff]
    %v920 = vld [vmem:[#allocation7 + $0x230] sm:$0xff]
    %v921 = vld [vmem:[#allocation7 + $0x238] sm:$0xff]
    %v922 = vld [vmem:[#allocation7 + $0x240] sm:$0xff]
    %v923 = vld [vmem:[#allocation7 + $0x248] sm:$0xff]
    %v924 = vld [vmem:[#allocation7 + $0x250] sm:$0xff]
    %v925 = vld [vmem:[#allocation7 + $0x258] sm:$0xff]
    %v926 = vld [vmem:[#allocation7 + $0x260] sm:$0xff]
    %v927 = vld [vmem:[#allocation7 + $0x268] sm:$0xff]
    %v928 = vld [vmem:[#allocation7 + $0x270] sm:$0xff]
    %v929 = vld [vmem:[#allocation7 + $0x278] sm:$0xff]
    %v930 = vld [vmem:[#allocation7 + $0x280] sm:$0xff]
    %v931 = vld [vmem:[#allocation7 + $0x288] sm:$0xff]
    %v932 = vld [vmem:[#allocation7 + $0x290] sm:$0xff]
    %v933 = vld [vmem:[#allocation7 + $0x298] sm:$0xff]
    %v934 = vld [vmem:[#allocation7 + $0x2a0] sm:$0xff]
    %v935 = vld [vmem:[#allocation7 + $0x2a8] sm:$0xff]
    %v936 = vld [vmem:[#allocation7 + $0x2b0] sm:$0xff]
    %v937 = vld [vmem:[#allocation7 + $0x2b8] sm:$0xff]
    %v938 = vld [vmem:[#allocation7 + $0x2c0] sm:$0xff]
    %v939 = vld [vmem:[#allocation7 + $0x2c8] sm:$0xff]
    %v940 = vld [vmem:[#allocation7 + $0x2d0] sm:$0xff]
    %v941 = vld [vmem:[#allocation7 + $0x2d8] sm:$0xff]
    %v942 = vld [vmem:[#allocation7 + $0x2e0] sm:$0xff]
    %v943 = vld [vmem:[#allocation7 + $0x2e8] sm:$0xff]
    %v944 = vld [vmem:[#allocation7 + $0x2f0] sm:$0xff]
    %v945 = vld [vmem:[#allocation7 + $0x2f8] sm:$0xff]
    %v946 = vld [vmem:[#allocation7 + $0x300] sm:$0xff]
    %v947 = vld [vmem:[#allocation7 + $0x308] sm:$0xff]
    %v948 = vld [vmem:[#allocation7 + $0x310] sm:$0xff]
    %v949 = vld [vmem:[#allocation7 + $0x318] sm:$0xff]
    %v950 = vld [vmem:[#allocation7 + $0x320] sm:$0xff]
    %v951 = vld [vmem:[#allocation7 + $0x328] sm:$0xff]
    %v952 = vld [vmem:[#allocation7 + $0x330] sm:$0xff]
    %v953 = vld [vmem:[#allocation7 + $0x338] sm:$0xff]
    %v954 = vld [vmem:[#allocation7 + $0x340] sm:$0xff]
    %v955 = vld [vmem:[#allocation7 + $0x348] sm:$0xff]
    %v956 = vld [vmem:[#allocation7 + $0x350] sm:$0xff]
    %v957 = vld [vmem:[#allocation7 + $0x358] sm:$0xff]
    %v958 = vld [vmem:[#allocation7 + $0x360] sm:$0xff]
    %v959 = vld [vmem:[#allocation7 + $0x368] sm:$0xff]
    %v960 = vld [vmem:[#allocation7 + $0x370] sm:$0xff]
    %v961 = vld [vmem:[#allocation7 + $0x378] sm:$0xff]
    %v962 = vld [vmem:[#allocation7 + $0x380] sm:$0xff]
    %v963 = vld [vmem:[#allocation7 + $0x388] sm:$0xff]
    %v964 = vld [vmem:[#allocation7 + $0x390] sm:$0xff]
    %v965 = vld [vmem:[#allocation7 + $0x398] sm:$0xff]
    %v966 = vld [vmem:[#allocation7 + $0x3a0] sm:$0xff]
    %v967 = vld [vmem:[#allocation7 + $0x3a8] sm:$0xff]
    %v968 = vld [vmem:[#allocation7 + $0x3b0] sm:$0xff]
    %v969 = vld [vmem:[#allocation7 + $0x3b8] sm:$0xff]
    %v970 = vld [vmem:[#allocation7 + $0x3c0] sm:$0xff]
    %v971 = vld [vmem:[#allocation7 + $0x3c8] sm:$0xff]
    %v972 = vld [vmem:[#allocation7 + $0x3d0] sm:$0xff]
    %v973 = vld [vmem:[#allocation7 + $0x3d8] sm:$0xff]
    %v974 = vld [vmem:[#allocation7 + $0x3e0] sm:$0xff]
    %v975 = vld [vmem:[#allocation7 + $0x3e8] sm:$0xff]
    %v976 = vld [vmem:[#allocation7 + $0x3f0] sm:$0xff]
    %v977 = vld [vmem:[#allocation7 + $0x3f8] sm:$0xff]
    %v978 = vld [vmem:[#allocation7 + $0x400] sm:$0xff]
    %v979 = vld [vmem:[#allocation7 + $0x408] sm:$0xff]
    %v980 = vld [vmem:[#allocation7 + $0x410] sm:$0xff]
    %v981 = vld [vmem:[#allocation7 + $0x418] sm:$0xff]
    %v982 = vld [vmem:[#allocation7 + $0x420] sm:$0xff]
    %v983 = vld [vmem:[#allocation7 + $0x428] sm:$0xff]
    %v984 = vld [vmem:[#allocation7 + $0x430] sm:$0xff]
    %v985 = vld [vmem:[#allocation7 + $0x438] sm:$0xff]
    %v986 = vld [vmem:[#allocation7 + $0x440] sm:$0xff]
    %v987 = vld [vmem:[#allocation7 + $0x448] sm:$0xff]
    %v988 = vld [vmem:[#allocation7 + $0x450] sm:$0xff]
    %v989 = vld [vmem:[#allocation7 + $0x458] sm:$0xff]
    %v990 = vld [vmem:[#allocation7 + $0x460] sm:$0xff]
    %v991 = vld [vmem:[#allocation7 + $0x468] sm:$0xff]
    %v992 = vld [vmem:[#allocation7 + $0x470] sm:$0xff]
    %v993 = vld [vmem:[#allocation7 + $0x478] sm:$0xff]
    %v994 = vld [vmem:[#allocation7 + $0x480] sm:$0xff]
    %v995 = vld [vmem:[#allocation7 + $0x488] sm:$0xff]
    %v996 = vld [vmem:[#allocation7 + $0x490] sm:$0xff]
    %v997 = vld [vmem:[#allocation7 + $0x498] sm:$0xff]
    %v998 = vld [vmem:[#allocation7 + $0x4a0] sm:$0xff]
    %v999 = vld [vmem:[#allocation7 + $0x4a8] sm:$0xff]
    %v1000 = vld [vmem:[#allocation7 + $0x4b0] sm:$0xff]
    %v1001 = vld [vmem:[#allocation7 + $0x4b8] sm:$0xff]
    %v1002 = vld [vmem:[#allocation7 + $0x4c0] sm:$0xff]
    %v1003 = vld [vmem:[#allocation7 + $0x4c8] sm:$0xff]
    %v1004 = vld [vmem:[#allocation7 + $0x4d0] sm:$0xff]
    %v1005 = vld [vmem:[#allocation7 + $0x4d8] sm:$0xff]
    %v1006 = vld [vmem:[#allocation7 + $0x4e0] sm:$0xff]
    %v1007 = vld [vmem:[#allocation7 + $0x4e8] sm:$0xff]
    %v1008 = vld [vmem:[#allocation7 + $0x4f0] sm:$0xff]
    %v1009 = vld [vmem:[#allocation7 + $0x4f8] sm:$0xff]
    %v1010 = vld [vmem:[#allocation7 + $0x500] sm:$0xff]
    %v1011 = vld [vmem:[#allocation7 + $0x508] sm:$0xff]
    %v1012 = vld [vmem:[#allocation7 + $0x510] sm:$0xff]
    %v1013 = vld [vmem:[#allocation7 + $0x518] sm:$0xff]
    %v1014 = vld [vmem:[#allocation7 + $0x520] sm:$0xff]
    %v1015 = vld [vmem:[#allocation7 + $0x528] sm:$0xff]
    %v1016 = vld [vmem:[#allocation7 + $0x530] sm:$0xff]
    %v1017 = vld [vmem:[#allocation7 + $0x538] sm:$0xff]
    %v1018 = vld [vmem:[#allocation7 + $0x540] sm:$0xff]
    %v1019 = vld [vmem:[#allocation7 + $0x548] sm:$0xff]
    %v1020 = vld [vmem:[#allocation7 + $0x550] sm:$0xff]
    %v1021 = vld [vmem:[#allocation7 + $0x558] sm:$0xff]
    %v1022 = vld [vmem:[#allocation7 + $0x560] sm:$0xff]
    %v1023 = vld [vmem:[#allocation7 + $0x568] sm:$0xff]
    %v1024 = vld [vmem:[#allocation7 + $0x570] sm:$0xff]
    %v1025 = vld [vmem:[#allocation7 + $0x578] sm:$0xff]
    %v1026 = vld [vmem:[#allocation7 + $0x580] sm:$0xff]
    %v1027 = vld [vmem:[#allocation7 + $0x588] sm:$0xff]
    %v1028 = vld [vmem:[#allocation7 + $0x590] sm:$0xff]
    %v1029 = vld [vmem:[#allocation7 + $0x598] sm:$0xff]
    %v1030 = vld [vmem:[#allocation7 + $0x5a0] sm:$0xff]
    %v1031 = vld [vmem:[#allocation7 + $0x5a8] sm:$0xff]
    %v1032 = vld [vmem:[#allocation7 + $0x5b0] sm:$0xff]
    %v1033 = vld [vmem:[#allocation7 + $0x5b8] sm:$0xff]
    %v1034 = vld [vmem:[#allocation7 + $0x5c0] sm:$0xff]
    %v1035 = vld [vmem:[#allocation7 + $0x5c8] sm:$0xff]
    %v1036 = vld [vmem:[#allocation7 + $0x5d0] sm:$0xff]
    %v1037 = vld [vmem:[#allocation7 + $0x5d8] sm:$0xff]
    %v1038 = vld [vmem:[#allocation7 + $0x5e0] sm:$0xff]
    %v1039 = vld [vmem:[#allocation7 + $0x5e8] sm:$0xff]
    %v1040 = vld [vmem:[#allocation7 + $0x5f0] sm:$0xff]
    %v1041 = vld [vmem:[#allocation7 + $0x5f8] sm:$0xff]
    %v1042 = vld [vmem:[#allocation7 + $0x600] sm:$0xff]
    %v1043 = vld [vmem:[#allocation7 + $0x608] sm:$0xff]
    %v1044 = vld [vmem:[#allocation7 + $0x610] sm:$0xff]
    %v1045 = vld [vmem:[#allocation7 + $0x618] sm:$0xff]
    %v1046 = vld [vmem:[#allocation7 + $0x620] sm:$0xff]
    %v1047 = vld [vmem:[#allocation7 + $0x628] sm:$0xff]
    %v1048 = vld [vmem:[#allocation7 + $0x630] sm:$0xff]
    %v1049 = vld [vmem:[#allocation7 + $0x638] sm:$0xff]
    %v1050 = vld [vmem:[#allocation7 + $0x640] sm:$0xff]
    %v1051 = vld [vmem:[#allocation7 + $0x648] sm:$0xff]
    %v1052 = vld [vmem:[#allocation7 + $0x650] sm:$0xff]
    %v1053 = vld [vmem:[#allocation7 + $0x658] sm:$0xff]
    %v1054 = vld [vmem:[#allocation7 + $0x660] sm:$0xff]
    %v1055 = vld [vmem:[#allocation7 + $0x668] sm:$0xff]
    %v1056 = vld [vmem:[#allocation7 + $0x670] sm:$0xff]
    %v1057 = vld [vmem:[#allocation7 + $0x678] sm:$0xff]
    %v1058 = vld [vmem:[#allocation7 + $0x680] sm:$0xff]
    %v1059 = vld [vmem:[#allocation7 + $0x688] sm:$0xff]
    %v1060 = vld [vmem:[#allocation7 + $0x690] sm:$0xff]
    %v1061 = vld [vmem:[#allocation7 + $0x698] sm:$0xff]
    %v1062 = vld [vmem:[#allocation7 + $0x6a0] sm:$0xff]
    %v1063 = vld [vmem:[#allocation7 + $0x6a8] sm:$0xff]
    %v1064 = vld [vmem:[#allocation7 + $0x6b0] sm:$0xff]
    %v1065 = vld [vmem:[#allocation7 + $0x6b8] sm:$0xff]
    %v1066 = vld [vmem:[#allocation7 + $0x6c0] sm:$0xff]
    %v1067 = vld [vmem:[#allocation7 + $0x6c8] sm:$0xff]
    %v1068 = vld [vmem:[#allocation7 + $0x6d0] sm:$0xff]
    %v1069 = vld [vmem:[#allocation7 + $0x6d8] sm:$0xff]
    %v1070 = vld [vmem:[#allocation7 + $0x6e0] sm:$0xff]
    %v1071 = vld [vmem:[#allocation7 + $0x6e8] sm:$0xff]
    %v1072 = vld [vmem:[#allocation7 + $0x6f0] sm:$0xff]
    %v1073 = vld [vmem:[#allocation7 + $0x6f8] sm:$0xff]
    %v1074 = vld [vmem:[#allocation7 + $0x700] sm:$0xff]
    %v1075 = vld [vmem:[#allocation7 + $0x708] sm:$0xff]
    %v1076 = vld [vmem:[#allocation7 + $0x710] sm:$0xff]
    %v1077 = vld [vmem:[#allocation7 + $0x718] sm:$0xff]
    %v1078 = vld [vmem:[#allocation7 + $0x720] sm:$0xff]
    %v1079 = vld [vmem:[#allocation7 + $0x728] sm:$0xff]
    %v1080 = vld [vmem:[#allocation7 + $0x730] sm:$0xff]
    %v1081 = vld [vmem:[#allocation7 + $0x738] sm:$0xff]
    %v1082 = vld [vmem:[#allocation7 + $0x740] sm:$0xff]
    %v1083 = vld [vmem:[#allocation7 + $0x748] sm:$0xff]
    %v1084 = vld [vmem:[#allocation7 + $0x750] sm:$0xff]
    %v1085 = vld [vmem:[#allocation7 + $0x758] sm:$0xff]
    %v1086 = vld [vmem:[#allocation7 + $0x760] sm:$0xff]
    %v1087 = vld [vmem:[#allocation7 + $0x768] sm:$0xff]
    %v1088 = vld [vmem:[#allocation7 + $0x770] sm:$0xff]
    %v1089 = vld [vmem:[#allocation7 + $0x778] sm:$0xff]
    %v1090 = vld [vmem:[#allocation7 + $0x780] sm:$0xff]
    %v1091 = vld [vmem:[#allocation7 + $0x788] sm:$0xff]
    %v1092 = vld [vmem:[#allocation7 + $0x790] sm:$0xff]
    %v1093 = vld [vmem:[#allocation7 + $0x798] sm:$0xff]
    %v1094 = vld [vmem:[#allocation7 + $0x7a0] sm:$0xff]
    %v1095 = vld [vmem:[#allocation7 + $0x7a8] sm:$0xff]
    %v1096 = vld [vmem:[#allocation7 + $0x7b0] sm:$0xff]
    %v1097 = vld [vmem:[#allocation7 + $0x7b8] sm:$0xff]
    %v1098 = vld [vmem:[#allocation7 + $0x7c0] sm:$0xff]
    %v1099 = vld [vmem:[#allocation7 + $0x7c8] sm:$0xff]
    %v1100 = vld [vmem:[#allocation7 + $0x7d0] sm:$0xff]
    %v1101 = vld [vmem:[#allocation7 + $0x7d8] sm:$0xff]
    %v1102 = vld [vmem:[#allocation7 + $0x7e0] sm:$0xff]
    %v1103 = vld [vmem:[#allocation7 + $0x7e8] sm:$0xff]
    %v1104 = vld [vmem:[#allocation7 + $0x7f0] sm:$0xff]
    %v1105 = vld [vmem:[#allocation7 + $0x7f8] sm:$0xff]
    %v1106 = vld [vmem:[#allocation7 + $0x800] sm:$0xff]
    %v1107 = vld [vmem:[#allocation7 + $0x808] sm:$0xff]
    %v1108 = vld [vmem:[#allocation7 + $0x810] sm:$0xff]
    %v1109 = vld [vmem:[#allocation7 + $0x818] sm:$0xff]
    %v1110 = vld [vmem:[#allocation7 + $0x820] sm:$0xff]
    %v1111 = vld [vmem:[#allocation7 + $0x828] sm:$0xff]
    %v1112 = vld [vmem:[#allocation7 + $0x830] sm:$0xff]
    %v1113 = vld [vmem:[#allocation7 + $0x838] sm:$0xff]
    %v1114 = vld [vmem:[#allocation7 + $0x840] sm:$0xff]
    %v1115 = vld [vmem:[#allocation7 + $0x848] sm:$0xff]
    %v1116 = vld [vmem:[#allocation7 + $0x850] sm:$0xff]
    %v1117 = vld [vmem:[#allocation7 + $0x858] sm:$0xff]
    %v1118 = vld [vmem:[#allocation7 + $0x860] sm:$0xff]
    %v1119 = vld [vmem:[#allocation7 + $0x868] sm:$0xff]
    %v1120 = vld [vmem:[#allocation7 + $0x870] sm:$0xff]
    %v1121 = vld [vmem:[#allocation7 + $0x878] sm:$0xff]
    %v1122 = vld [vmem:[#allocation7 + $0x880] sm:$0xff]
    %v1123 = vld [vmem:[#allocation7 + $0x888] sm:$0xff]
    %v1124 = vld [vmem:[#allocation7 + $0x890] sm:$0xff]
    %v1125 = vld [vmem:[#allocation7 + $0x898] sm:$0xff]
    %v1126 = vld [vmem:[#allocation7 + $0x8a0] sm:$0xff]
    %v1127 = vld [vmem:[#allocation7 + $0x8a8] sm:$0xff]
    %v1128 = vld [vmem:[#allocation7 + $0x8b0] sm:$0xff]
    %v1129 = vld [vmem:[#allocation7 + $0x8b8] sm:$0xff]
    %v1130 = vld [vmem:[#allocation7 + $0x8c0] sm:$0xff]
    %v1131 = vld [vmem:[#allocation7 + $0x8c8] sm:$0xff]
    %v1132 = vld [vmem:[#allocation7 + $0x8d0] sm:$0xff]
    %v1133 = vld [vmem:[#allocation7 + $0x8d8] sm:$0xff]
    %v1134 = vld [vmem:[#allocation7 + $0x8e0] sm:$0xff]
    %v1135 = vld [vmem:[#allocation7 + $0x8e8] sm:$0xff]
    %v1136 = vld [vmem:[#allocation7 + $0x8f0] sm:$0xff]
    %v1137 = vld [vmem:[#allocation7 + $0x8f8] sm:$0xff]
    %v1138 = vld [vmem:[#allocation8] sm:$0x3]
    %v1140 = vlaneseq
    %v1141 = vshrl.u32 %v1140, 7
    %v1142 = vsub.s32 0, %v1141
    %v1143 = vrot.slane %v1138, %v1142
    %v1144 = vlaneseq
    %v1145 = vshrl.u32 %v1144, 7
    %v1146 = vsub.s32 1, %v1145
    %v1147 = vrot.slane %v1138, %v1146
    %1150 = vmatprep.subr.mxu0 %v881
    %1151 = vmatpush1.msra.mxu0 %v880
    %1152 = vmatprep.subr.mxu0 %v879
    %1153 = vmatpush1.msra.mxu0 %v878
    %1154 = vmatprep.subr.mxu0 %v877
    %1155 = vmatpush1.msra.mxu0 %v876
    %1156 = vmatprep.subr.mxu0 %v875
    %1157 = vmatpush1.msra.mxu0 %v874
    %1158 = vmatprep.subr.mxu0 %v873
    %1159 = vmatpush1.msra.mxu0 %v872
    %1160 = vmatprep.subr.mxu0 %v871
    %1161 = vmatpush1.msra.mxu0 %v870
    %1162 = vmatprep.subr.mxu0 %v869
    %1163 = vmatpush1.msra.mxu0 %v868
    %1164 = vmatprep.subr.mxu0 %v867
    %1165 = vmatpush1.msra.mxu0 %v866
    %1166 = vmatprep.subr.mxu0 %v865
    %1167 = vmatpush1.msra.mxu0 %v864
    %1168 = vmatprep.subr.mxu0 %v863
    %1169 = vmatpush1.msra.mxu0 %v862
    %1170 = vmatprep.subr.mxu0 %v861
    %1171 = vmatpush1.msra.mxu0 %v860
    %1172 = vmatprep.subr.mxu0 %v859
    %1173 = vmatpush1.msra.mxu0 %v858
    %1174 = vmatprep.subr.mxu0 %v857
    %1175 = vmatpush1.msra.mxu0 %v856
    %1176 = vmatprep.subr.mxu0 %v855
    %1177 = vmatpush1.msra.mxu0 %v854
    %1178 = vmatprep.subr.mxu0 %v853
    %1179 = vmatpush1.msra.mxu0 %v852
    %1180 = vmatprep.subr.mxu0 %v851
    %1181 = vmatpush1.msra.mxu0 %v850
    %1182 = vmatprep.subr.mxu0 %v913
    %1183 = vmatpush2.msra.mxu0 %v912
    %1184 = vmatprep.subr.mxu0 %v911
    %1185 = vmatpush2.msra.mxu0 %v910
    %1186 = vmatprep.subr.mxu0 %v909
    %1187 = vmatpush2.msra.mxu0 %v908
    %1188 = vmatprep.subr.mxu0 %v907
    %1189 = vmatpush2.msra.mxu0 %v906
    %1190 = vmatprep.subr.mxu0 %v905
    %1191 = vmatpush2.msra.mxu0 %v904
    %1192 = vmatprep.subr.mxu0 %v903
    %1193 = vmatpush2.msra.mxu0 %v902
    %1194 = vmatprep.subr.mxu0 %v901
    %1195 = vmatpush2.msra.mxu0 %v900
    %1196 = vmatprep.subr.mxu0 %v899
    %1197 = vmatpush2.msra.mxu0 %v898
    %1198 = vmatprep.subr.mxu0 %v897
    %1199 = vmatpush2.msra.mxu0 %v896
    %1200 = vmatprep.subr.mxu0 %v895
    %1201 = vmatpush2.msra.mxu0 %v894
    %1202 = vmatprep.subr.mxu0 %v893
    %1203 = vmatpush2.msra.mxu0 %v892
    %1204 = vmatprep.subr.mxu0 %v891
    %1205 = vmatpush2.msra.mxu0 %v890
    %1206 = vmatprep.subr.mxu0 %v889
    %1207 = vmatpush2.msra.mxu0 %v888
    %1208 = vmatprep.subr.mxu0 %v887
    %1209 = vmatpush2.msra.mxu0 %v886
    %1210 = vmatprep.subr.mxu0 %v885
    %1211 = vmatpush2.msra.mxu0 %v884
    %1212 = vmatprep.subr.mxu0 %v883
    %1213 = vmatpush2.msra.mxu0 %v882
    %1214 = vmatprep.mubr.f32.mxu0 %v842
    %1215 = vmatmul.mubr.f32.gmra.mxu0 %v841
    %v1216 = vpop.f32.mrf.mxu0
    %v1217 = vadd.f32 %v1143, %v1216
    %v1218 = vpop.f32.mrf.mxu0
    %v1219 = vadd.f32 %v1147, %v1218
    %1220 = vdwg.mxu0
    %1221 = vmatprep.subr.mxu0 %v945
    %1222 = vmatpush1.msra.mxu0 %v944
    %1223 = vmatprep.subr.mxu0 %v943
    %1224 = vmatpush1.msra.mxu0 %v942
    %1225 = vmatprep.subr.mxu0 %v941
    %1226 = vmatpush1.msra.mxu0 %v940
    %1227 = vmatprep.subr.mxu0 %v939
    %1228 = vmatpush1.msra.mxu0 %v938
    %1229 = vmatprep.subr.mxu0 %v937
    %1230 = vmatpush1.msra.mxu0 %v936
    %1231 = vmatprep.subr.mxu0 %v935
    %1232 = vmatpush1.msra.mxu0 %v934
    %1233 = vmatprep.subr.mxu0 %v933
    %1234 = vmatpush1.msra.mxu0 %v932
    %1235 = vmatprep.subr.mxu0 %v931
    %1236 = vmatpush1.msra.mxu0 %v930
    %1237 = vmatprep.subr.mxu0 %v929
    %1238 = vmatpush1.msra.mxu0 %v928
    %1239 = vmatprep.subr.mxu0 %v927
    %1240 = vmatpush1.msra.mxu0 %v926
    %1241 = vmatprep.subr.mxu0 %v925
    %1242 = vmatpush1.msra.mxu0 %v924
    %1243 = vmatprep.subr.mxu0 %v923
    %1244 = vmatpush1.msra.mxu0 %v922
    %1245 = vmatprep.subr.mxu0 %v921
    %1246 = vmatpush1.msra.mxu0 %v920
    %1247 = vmatprep.subr.mxu0 %v919
    %1248 = vmatpush1.msra.mxu0 %v918
    %1249 = vmatprep.subr.mxu0 %v917
    %1250 = vmatpush1.msra.mxu0 %v916
    %1251 = vmatprep.subr.mxu0 %v915
    %1252 = vmatpush1.msra.mxu0 %v914
    %1253 = vmatprep.subr.mxu0 %v977
    %1254 = vmatpush2.msra.mxu0 %v976
    %1255 = vmatprep.subr.mxu0 %v975
    %1256 = vmatpush2.msra.mxu0 %v974
    %1257 = vmatprep.subr.mxu0 %v973
    %1258 = vmatpush2.msra.mxu0 %v972
    %1259 = vmatprep.subr.mxu0 %v971
    %1260 = vmatpush2.msra.mxu0 %v970
    %1261 = vmatprep.subr.mxu0 %v969
    %1262 = vmatpush2.msra.mxu0 %v968
    %1263 = vmatprep.subr.mxu0 %v967
    %1264 = vmatpush2.msra.mxu0 %v966
    %1265 = vmatprep.subr.mxu0 %v965
    %1266 = vmatpush2.msra.mxu0 %v964
    %1267 = vmatprep.subr.mxu0 %v963
    %1268 = vmatpush2.msra.mxu0 %v962
    %1269 = vmatprep.subr.mxu0 %v961
    %1270 = vmatpush2.msra.mxu0 %v960
    %1271 = vmatprep.subr.mxu0 %v959
    %1272 = vmatpush2.msra.mxu0 %v958
    %1273 = vmatprep.subr.mxu0 %v957
    %1274 = vmatpush2.msra.mxu0 %v956
    %1275 = vmatprep.subr.mxu0 %v955
    %1276 = vmatpush2.msra.mxu0 %v954
    %1277 = vmatprep.subr.mxu0 %v953
    %1278 = vmatpush2.msra.mxu0 %v952
    %1279 = vmatprep.subr.mxu0 %v951
    %1280 = vmatpush2.msra.mxu0 %v950
    %1281 = vmatprep.subr.mxu0 %v949
    %1282 = vmatpush2.msra.mxu0 %v948
    %1283 = vmatprep.subr.mxu0 %v947
    %1284 = vmatpush2.msra.mxu0 %v946
    %1285 = vmatprep.mubr.f32.mxu0 %v844
    %1286 = vmatmul.mubr.f32.gmra.mxu0 %v843
    %v1287 = vpop.f32.mrf.mxu0
    %v1288 = vadd.f32 %v1217, %v1287
    %v1289 = vpop.f32.mrf.mxu0
    %v1290 = vadd.f32 %v1219, %v1289
    %1291 = vdwg.mxu0
    %1292 = vmatprep.subr.mxu0 %v1009
    %1293 = vmatpush1.msra.mxu0 %v1008
    %1294 = vmatprep.subr.mxu0 %v1007
    %1295 = vmatpush1.msra.mxu0 %v1006
    %1296 = vmatprep.subr.mxu0 %v1005
    %1297 = vmatpush1.msra.mxu0 %v1004
    %1298 = vmatprep.subr.mxu0 %v1003
    %1299 = vmatpush1.msra.mxu0 %v1002
    %1300 = vmatprep.subr.mxu0 %v1001
    %1301 = vmatpush1.msra.mxu0 %v1000
    %1302 = vmatprep.subr.mxu0 %v999
    %1303 = vmatpush1.msra.mxu0 %v998
    %1304 = vmatprep.subr.mxu0 %v997
    %1305 = vmatpush1.msra.mxu0 %v996
    %1306 = vmatprep.subr.mxu0 %v995
    %1307 = vmatpush1.msra.mxu0 %v994
    %1308 = vmatprep.subr.mxu0 %v993
    %1309 = vmatpush1.msra.mxu0 %v992
    %1310 = vmatprep.subr.mxu0 %v991
    %1311 = vmatpush1.msra.mxu0 %v990
    %1312 = vmatprep.subr.mxu0 %v989
    %1313 = vmatpush1.msra.mxu0 %v988
    %1314 = vmatprep.subr.mxu0 %v987
    %1315 = vmatpush1.msra.mxu0 %v986
    %1316 = vmatprep.subr.mxu0 %v985
    %1317 = vmatpush1.msra.mxu0 %v984
    %1318 = vmatprep.subr.mxu0 %v983
    %1319 = vmatpush1.msra.mxu0 %v982
    %1320 = vmatprep.subr.mxu0 %v981
    %1321 = vmatpush1.msra.mxu0 %v980
    %1322 = vmatprep.subr.mxu0 %v979
    %1323 = vmatpush1.msra.mxu0 %v978
    %1324 = vmatprep.subr.mxu0 %v1041
    %1325 = vmatpush2.msra.mxu0 %v1040
    %1326 = vmatprep.subr.mxu0 %v1039
    %1327 = vmatpush2.msra.mxu0 %v1038
    %1328 = vmatprep.subr.mxu0 %v1037
    %1329 = vmatpush2.msra.mxu0 %v1036
    %1330 = vmatprep.subr.mxu0 %v1035
    %1331 = vmatpush2.msra.mxu0 %v1034
    %1332 = vmatprep.subr.mxu0 %v1033
    %1333 = vmatpush2.msra.mxu0 %v1032
    %1334 = vmatprep.subr.mxu0 %v1031
    %1335 = vmatpush2.msra.mxu0 %v1030
    %1336 = vmatprep.subr.mxu0 %v1029
    %1337 = vmatpush2.msra.mxu0 %v1028
    %1338 = vmatprep.subr.mxu0 %v1027
    %1339 = vmatpush2.msra.mxu0 %v1026
    %1340 = vmatprep.subr.mxu0 %v1025
    %1341 = vmatpush2.msra.mxu0 %v1024
    %1342 = vmatprep.subr.mxu0 %v1023
    %1343 = vmatpush2.msra.mxu0 %v1022
    %1344 = vmatprep.subr.mxu0 %v1021
    %1345 = vmatpush2.msra.mxu0 %v1020
    %1346 = vmatprep.subr.mxu0 %v1019
    %1347 = vmatpush2.msra.mxu0 %v1018
    %1348 = vmatprep.subr.mxu0 %v1017
    %1349 = vmatpush2.msra.mxu0 %v1016
    %1350 = vmatprep.subr.mxu0 %v1015
    %1351 = vmatpush2.msra.mxu0 %v1014
    %1352 = vmatprep.subr.mxu0 %v1013
    %1353 = vmatpush2.msra.mxu0 %v1012
    %1354 = vmatprep.subr.mxu0 %v1011
    %1355 = vmatpush2.msra.mxu0 %v1010
    %1356 = vmatprep.mubr.f32.mxu0 %v846
    %1357 = vmatmul.mubr.f32.gmra.mxu0 %v845
    %v1358 = vpop.f32.mrf.mxu0
    %v1359 = vadd.f32 %v1288, %v1358
    %v1360 = vpop.f32.mrf.mxu0
    %v1361 = vadd.f32 %v1290, %v1360
    %1362 = vdwg.mxu0
    %1363 = vmatprep.subr.mxu0 %v1073
    %1364 = vmatpush1.msra.mxu0 %v1072
    %1365 = vmatprep.subr.mxu0 %v1071
    %1366 = vmatpush1.msra.mxu0 %v1070
    %1367 = vmatprep.subr.mxu0 %v1069
    %1368 = vmatpush1.msra.mxu0 %v1068
    %1369 = vmatprep.subr.mxu0 %v1067
    %1370 = vmatpush1.msra.mxu0 %v1066
    %1371 = vmatprep.subr.mxu0 %v1065
    %1372 = vmatpush1.msra.mxu0 %v1064
    %1373 = vmatprep.subr.mxu0 %v1063
    %1374 = vmatpush1.msra.mxu0 %v1062
    %1375 = vmatprep.subr.mxu0 %v1061
    %1376 = vmatpush1.msra.mxu0 %v1060
    %1377 = vmatprep.subr.mxu0 %v1059
    %1378 = vmatpush1.msra.mxu0 %v1058
    %1379 = vmatprep.subr.mxu0 %v1057
    %1380 = vmatpush1.msra.mxu0 %v1056
    %1381 = vmatprep.subr.mxu0 %v1055
    %1382 = vmatpush1.msra.mxu0 %v1054
    %1383 = vmatprep.subr.mxu0 %v1053
    %1384 = vmatpush1.msra.mxu0 %v1052
    %1385 = vmatprep.subr.mxu0 %v1051
    %1386 = vmatpush1.msra.mxu0 %v1050
    %1387 = vmatprep.subr.mxu0 %v1049
    %1388 = vmatpush1.msra.mxu0 %v1048
    %1389 = vmatprep.subr.mxu0 %v1047
    %1390 = vmatpush1.msra.mxu0 %v1046
    %1391 = vmatprep.subr.mxu0 %v1045
    %1392 = vmatpush1.msra.mxu0 %v1044
    %1393 = vmatprep.subr.mxu0 %v1043
    %1394 = vmatpush1.msra.mxu0 %v1042
    %1395 = vmatprep.subr.mxu0 %v1105
    %1396 = vmatpush2.msra.mxu0 %v1104
    %1397 = vmatprep.subr.mxu0 %v1103
    %1398 = vmatpush2.msra.mxu0 %v1102
    %1399 = vmatprep.subr.mxu0 %v1101
    %1400 = vmatpush2.msra.mxu0 %v1100
    %1401 = vmatprep.subr.mxu0 %v1099
    %1402 = vmatpush2.msra.mxu0 %v1098
    %1403 = vmatprep.subr.mxu0 %v1097
    %1404 = vmatpush2.msra.mxu0 %v1096
    %1405 = vmatprep.subr.mxu0 %v1095
    %1406 = vmatpush2.msra.mxu0 %v1094
    %1407 = vmatprep.subr.mxu0 %v1093
    %1408 = vmatpush2.msra.mxu0 %v1092
    %1409 = vmatprep.subr.mxu0 %v1091
    %1410 = vmatpush2.msra.mxu0 %v1090
    %1411 = vmatprep.subr.mxu0 %v1089
    %1412 = vmatpush2.msra.mxu0 %v1088
    %1413 = vmatprep.subr.mxu0 %v1087
    %1414 = vmatpush2.msra.mxu0 %v1086
    %1415 = vmatprep.subr.mxu0 %v1085
    %1416 = vmatpush2.msra.mxu0 %v1084
    %1417 = vmatprep.subr.mxu0 %v1083
    %1418 = vmatpush2.msra.mxu0 %v1082
    %1419 = vmatprep.subr.mxu0 %v1081
    %1420 = vmatpush2.msra.mxu0 %v1080
    %1421 = vmatprep.subr.mxu0 %v1079
    %1422 = vmatpush2.msra.mxu0 %v1078
    %1423 = vmatprep.subr.mxu0 %v1077
    %1424 = vmatpush2.msra.mxu0 %v1076
    %1425 = vmatprep.subr.mxu0 %v1075
    %1426 = vmatpush2.msra.mxu0 %v1074
    %1427 = vmatprep.mubr.f32.mxu0 %v848
    %1428 = vmatmul.mubr.f32.gmra.mxu0 %v847
    %v1429 = vpop.f32.mrf.mxu0
    %v1430 = vadd.f32 %v1359, %v1429
    %v1431 = vpop.f32.mrf.mxu0
    %v1432 = vadd.f32 %v1361, %v1431
    %1433 = vdwg.mxu0
    %1434 = vmatprep.subr.mxu0 %v1137
    %1435 = vmatpush1.msra.mxu0 %v1136
    %1436 = vmatprep.subr.mxu0 %v1135
    %1437 = vmatpush1.msra.mxu0 %v1134
    %1438 = vmatprep.subr.mxu0 %v1133
    %1439 = vmatpush1.msra.mxu0 %v1132
    %1440 = vmatprep.subr.mxu0 %v1131
    %1441 = vmatpush1.msra.mxu0 %v1130
    %1442 = vmatprep.subr.mxu0 %v1129
    %1443 = vmatpush1.msra.mxu0 %v1128
    %1444 = vmatprep.subr.mxu0 %v1127
    %1445 = vmatpush1.msra.mxu0 %v1126
    %1446 = vmatprep.subr.mxu0 %v1125
    %1447 = vmatpush1.msra.mxu0 %v1124
    %1448 = vmatprep.subr.mxu0 %v1123
    %1449 = vmatpush1.msra.mxu0 %v1122
    %1450 = vmatprep.subr.mxu0 %v1121
    %1451 = vmatpush1.msra.mxu0 %v1120
    %1452 = vmatprep.subr.mxu0 %v1119
    %1453 = vmatpush1.msra.mxu0 %v1118
    %1454 = vmatprep.subr.mxu0 %v1117
    %1455 = vmatpush1.msra.mxu0 %v1116
    %1456 = vmatprep.subr.mxu0 %v1115
    %1457 = vmatpush1.msra.mxu0 %v1114
    %1458 = vmatprep.subr.mxu0 %v1113
    %1459 = vmatpush1.msra.mxu0 %v1112
    %1460 = vmatprep.subr.mxu0 %v1111
    %1461 = vmatpush1.msra.mxu0 %v1110
    %1462 = vmatprep.subr.mxu0 %v1109
    %1463 = vmatpush1.msra.mxu0 %v1108
    %1464 = vmatprep.subr.mxu0 %v1107
    %1465 = vmatpush1.msra.mxu0 %v1106
    %1466 = vmatprep.subr.mxu0 0.0
    %1467 = vmatpush2.msra.mxu0 0.0
    %1468 = vmatprep.subr.mxu0 0.0
    %1469 = vmatpush2.msra.mxu0 0.0
    %1470 = vmatprep.subr.mxu0 0.0
    %1471 = vmatpush2.msra.mxu0 0.0
    %1472 = vmatprep.subr.mxu0 0.0
    %1473 = vmatpush2.msra.mxu0 0.0
    %1474 = vmatprep.subr.mxu0 0.0
    %1475 = vmatpush2.msra.mxu0 0.0
    %1476 = vmatprep.subr.mxu0 0.0
    %1477 = vmatpush2.msra.mxu0 0.0
    %1478 = vmatprep.subr.mxu0 0.0
    %1479 = vmatpush2.msra.mxu0 0.0
    %1480 = vmatprep.subr.mxu0 0.0
    %1481 = vmatpush2.msra.mxu0 0.0
    %1482 = vmatprep.subr.mxu0 0.0
    %1483 = vmatpush2.msra.mxu0 0.0
    %1484 = vmatprep.subr.mxu0 0.0
    %1485 = vmatpush2.msra.mxu0 0.0
    %1486 = vmatprep.subr.mxu0 0.0
    %1487 = vmatpush2.msra.mxu0 0.0
    %1488 = vmatprep.subr.mxu0 0.0
    %1489 = vmatpush2.msra.mxu0 0.0
    %1490 = vmatprep.subr.mxu0 0.0
    %1491 = vmatpush2.msra.mxu0 0.0
    %1492 = vmatprep.subr.mxu0 0.0
    %1493 = vmatpush2.msra.mxu0 0.0
    %1494 = vmatprep.subr.mxu0 0.0
    %1495 = vmatpush2.msra.mxu0 0.0
    %1496 = vmatprep.subr.mxu0 0.0
    %1497 = vmatpush2.msra.mxu0 0.0
    %1498 = vmatprep.mubr.f32.mxu0 0.0
    %1499 = vmatmul.mubr.f32.gmra.mxu0 %v849
    %v1500 = vpop.f32.mrf.mxu0
    %v1501 = vadd.f32 %v1430, %v1500
    %v1502 = vpop.f32.mrf.mxu0
    %v1503 = vadd.f32 %v1432, %v1502
    %1504 = vdwg.mxu0
    %v1505 = vmax.f32 %v1501, 0.0
    %v1506 = vmax.f32 %v1503, 0.0
    %v1507 = vld [vmem:[#allocation10] sm:$0xff]
    %v1508 = vld [vmem:[#allocation10 + $0x8] sm:$0xff]
    %v1509 = vld [vmem:[#allocation10 + $0x10] sm:$0xff]
    %v1510 = vld [vmem:[#allocation10 + $0x18] sm:$0xff]
    %v1511 = vld [vmem:[#allocation10 + $0x20] sm:$0xff]
    %v1512 = vld [vmem:[#allocation10 + $0x28] sm:$0xff]
    %v1513 = vld [vmem:[#allocation10 + $0x30] sm:$0xff]
    %v1514 = vld [vmem:[#allocation10 + $0x38] sm:$0xff]
    %v1515 = vld [vmem:[#allocation10 + $0x40] sm:$0xff]
    %v1516 = vld [vmem:[#allocation10 + $0x48] sm:$0xff]
    %v1517 = vld [vmem:[#allocation10 + $0x50] sm:$0xff]
    %v1518 = vld [vmem:[#allocation10 + $0x58] sm:$0xff]
    %v1519 = vld [vmem:[#allocation10 + $0x60] sm:$0xff]
    %v1520 = vld [vmem:[#allocation10 + $0x68] sm:$0xff]
    %v1521 = vld [vmem:[#allocation10 + $0x70] sm:$0xff]
    %v1522 = vld [vmem:[#allocation10 + $0x78] sm:$0xff]
    %v1523 = vld [vmem:[#allocation10 + $0x80] sm:$0xff]
    %v1524 = vld [vmem:[#allocation10 + $0x88] sm:$0xff]
    %v1525 = vld [vmem:[#allocation10 + $0x90] sm:$0xff]
    %v1526 = vld [vmem:[#allocation10 + $0x98] sm:$0xff]
    %v1527 = vld [vmem:[#allocation10 + $0xa0] sm:$0xff]
    %v1528 = vld [vmem:[#allocation10 + $0xa8] sm:$0xff]
    %v1529 = vld [vmem:[#allocation10 + $0xb0] sm:$0xff]
    %v1530 = vld [vmem:[#allocation10 + $0xb8] sm:$0xff]
    %v1531 = vld [vmem:[#allocation10 + $0xc0] sm:$0xff]
    %v1532 = vld [vmem:[#allocation10 + $0xc8] sm:$0xff]
    %v1533 = vld [vmem:[#allocation10 + $0xd0] sm:$0xff]
    %v1534 = vld [vmem:[#allocation10 + $0xd8] sm:$0xff]
    %v1535 = vld [vmem:[#allocation10 + $0xe0] sm:$0xff]
    %v1536 = vld [vmem:[#allocation10 + $0xe8] sm:$0xff]
    %v1537 = vld [vmem:[#allocation10 + $0xf0] sm:$0xff]
    %v1538 = vld [vmem:[#allocation10 + $0xf8] sm:$0xff]
    %v1539 = vld [vmem:[#allocation11] sm:$0x1]
    %v1541 = vlaneseq
    %v1542 = vshrl.u32 %v1541, 7
    %v1543 = vsub.s32 0, %v1542
    %v1544 = vrot.slane %v1539, %v1543
    %1546 = vmatprep.subr.mxu0 0.0
    %1547 = vmatpush1.msra.mxu0 %v1522
    %1548 = vmatprep.subr.mxu0 0.0
    %1549 = vmatpush1.msra.mxu0 %v1521
    %1550 = vmatprep.subr.mxu0 0.0
    %1551 = vmatpush1.msra.mxu0 %v1520
    %1552 = vmatprep.subr.mxu0 0.0
    %1553 = vmatpush1.msra.mxu0 %v1519
    %1554 = vmatprep.subr.mxu0 0.0
    %1555 = vmatpush1.msra.mxu0 %v1518
    %1556 = vmatprep.subr.mxu0 0.0
    %1557 = vmatpush1.msra.mxu0 %v1517
    %1558 = vmatprep.subr.mxu0 0.0
    %1559 = vmatpush1.msra.mxu0 %v1516
    %1560 = vmatprep.subr.mxu0 0.0
    %1561 = vmatpush1.msra.mxu0 %v1515
    %1562 = vmatprep.subr.mxu0 0.0
    %1563 = vmatpush1.msra.mxu0 %v1514
    %1564 = vmatprep.subr.mxu0 0.0
    %1565 = vmatpush1.msra.mxu0 %v1513
    %1566 = vmatprep.subr.mxu0 0.0
    %1567 = vmatpush1.msra.mxu0 %v1512
    %1568 = vmatprep.subr.mxu0 0.0
    %1569 = vmatpush1.msra.mxu0 %v1511
    %1570 = vmatprep.subr.mxu0 0.0
    %1571 = vmatpush1.msra.mxu0 %v1510
    %1572 = vmatprep.subr.mxu0 0.0
    %1573 = vmatpush1.msra.mxu0 %v1509
    %1574 = vmatprep.subr.mxu0 0.0
    %1575 = vmatpush1.msra.mxu0 %v1508
    %1576 = vmatprep.subr.mxu0 0.0
    %1577 = vmatpush1.msra.mxu0 %v1507
    %1578 = vmatprep.subr.mxu0 0.0
    %1579 = vmatpush2.msra.mxu0 %v1538
    %1580 = vmatprep.subr.mxu0 0.0
    %1581 = vmatpush2.msra.mxu0 %v1537
    %1582 = vmatprep.subr.mxu0 0.0
    %1583 = vmatpush2.msra.mxu0 %v1536
    %1584 = vmatprep.subr.mxu0 0.0
    %1585 = vmatpush2.msra.mxu0 %v1535
    %1586 = vmatprep.subr.mxu0 0.0
    %1587 = vmatpush2.msra.mxu0 %v1534
    %1588 = vmatprep.subr.mxu0 0.0
    %1589 = vmatpush2.msra.mxu0 %v1533
    %1590 = vmatprep.subr.mxu0 0.0
    %1591 = vmatpush2.msra.mxu0 %v1532
    %1592 = vmatprep.subr.mxu0 0.0
    %1593 = vmatpush2.msra.mxu0 %v1531
    %1594 = vmatprep.subr.mxu0 0.0
    %1595 = vmatpush2.msra.mxu0 %v1530
    %1596 = vmatprep.subr.mxu0 0.0
    %1597 = vmatpush2.msra.mxu0 %v1529
    %1598 = vmatprep.subr.mxu0 0.0
    %1599 = vmatpush2.msra.mxu0 %v1528
    %1600 = vmatprep.subr.mxu0 0.0
    %1601 = vmatpush2.msra.mxu0 %v1527
    %1602 = vmatprep.subr.mxu0 0.0
    %1603 = vmatpush2.msra.mxu0 %v1526
    %1604 = vmatprep.subr.mxu0 0.0
    %1605 = vmatpush2.msra.mxu0 %v1525
    %1606 = vmatprep.subr.mxu0 0.0
    %1607 = vmatpush2.msra.mxu0 %v1524
    %1608 = vmatprep.subr.mxu0 0.0
    %1609 = vmatpush2.msra.mxu0 %v1523
    %1610 = vmatprep.mubr.f32.mxu0 %v1506
    %1611 = vmatmul.mubr.f32.gmra.mxu0 %v1505
    %v1612 = vpop.f32.mrf.mxu0
    %v1613 = vadd.f32 %v1544, %v1612
    %v1614 = vpop.f32.mrf.mxu0
    %1615 = vdwg.mxu0
    %v1616 = vmax.f32 %v1613, 0.0
    %v1617 = vld [vmem:[%s7] sm:$0xff]
    %v1618 = vld [vmem:[%s7 + $0x8] sm:$0xff]
    %v1619 = vld [vmem:[%s7 + $0x10] sm:$0xff]
    %v1620 = vld [vmem:[%s7 + $0x18] sm:$0xff]
    %v1621 = vld [vmem:[%s7 + $0x20] sm:$0xff]
    %v1622 = vld [vmem:[%s7 + $0x28] sm:$0xff]
    %v1623 = vld [vmem:[%s7 + $0x30] sm:$0xff]
    %v1624 = vld [vmem:[%s7 + $0x38] sm:$0xff]
    %v1625 = vld [vmem:[%s7 + $0x40] sm:$0xff]
    %v1626 = vld [vmem:[%s7 + $0x48] sm:$0xff]
    %v1627 = vld [vmem:[%s7 + $0x50] sm:$0xff]
    %v1628 = vld [vmem:[%s7 + $0x58] sm:$0xff]
    %v1629 = vld [vmem:[%s7 + $0x60] sm:$0xff]
    %v1630 = vld [vmem:[%s7 + $0x68] sm:$0xff]
    %v1631 = vld [vmem:[%s7 + $0x70] sm:$0xff]
    %v1632 = vld [vmem:[%s7 + $0x78] sm:$0xff]
    %v1633 = vld [vmem:[#allocation13] sm:$0x1]
    %v1635 = vlaneseq
    %v1636 = vshrl.u32 %v1635, 7
    %v1637 = vsub.s32 0, %v1636
    %v1638 = vrot.slane %v1633, %v1637
    %1640 = vmatprep.subr.mxu0 0.0
    %1641 = vmatpush1.msra.mxu0 %v1632
    %1642 = vmatprep.subr.mxu0 0.0
    %1643 = vmatpush1.msra.mxu0 %v1631
    %1644 = vmatprep.subr.mxu0 0.0
    %1645 = vmatpush1.msra.mxu0 %v1630
    %1646 = vmatprep.subr.mxu0 0.0
    %1647 = vmatpush1.msra.mxu0 %v1629
    %1648 = vmatprep.subr.mxu0 0.0
    %1649 = vmatpush1.msra.mxu0 %v1628
    %1650 = vmatprep.subr.mxu0 0.0
    %1651 = vmatpush1.msra.mxu0 %v1627
    %1652 = vmatprep.subr.mxu0 0.0
    %1653 = vmatpush1.msra.mxu0 %v1626
    %1654 = vmatprep.subr.mxu0 0.0
    %1655 = vmatpush1.msra.mxu0 %v1625
    %1656 = vmatprep.subr.mxu0 0.0
    %1657 = vmatpush1.msra.mxu0 %v1624
    %1658 = vmatprep.subr.mxu0 0.0
    %1659 = vmatpush1.msra.mxu0 %v1623
    %1660 = vmatprep.subr.mxu0 0.0
    %1661 = vmatpush1.msra.mxu0 %v1622
    %1662 = vmatprep.subr.mxu0 0.0
    %1663 = vmatpush1.msra.mxu0 %v1621
    %1664 = vmatprep.subr.mxu0 0.0
    %1665 = vmatpush1.msra.mxu0 %v1620
    %1666 = vmatprep.subr.mxu0 0.0
    %1667 = vmatpush1.msra.mxu0 %v1619
    %1668 = vmatprep.subr.mxu0 0.0
    %1669 = vmatpush1.msra.mxu0 %v1618
    %1670 = vmatprep.subr.mxu0 0.0
    %1671 = vmatpush1.msra.mxu0 %v1617
    %1672 = vmatprep.subr.mxu0 0.0
    %1673 = vmatpush2.msra.mxu0 0.0
    %1674 = vmatprep.subr.mxu0 0.0
    %1675 = vmatpush2.msra.mxu0 0.0
    %1676 = vmatprep.subr.mxu0 0.0
    %1677 = vmatpush2.msra.mxu0 0.0
    %1678 = vmatprep.subr.mxu0 0.0
    %1679 = vmatpush2.msra.mxu0 0.0
    %1680 = vmatprep.subr.mxu0 0.0
    %1681 = vmatpush2.msra.mxu0 0.0
    %1682 = vmatprep.subr.mxu0 0.0
    %1683 = vmatpush2.msra.mxu0 0.0
    %1684 = vmatprep.subr.mxu0 0.0
    %1685 = vmatpush2.msra.mxu0 0.0
    %1686 = vmatprep.subr.mxu0 0.0
    %1687 = vmatpush2.msra.mxu0 0.0
    %1688 = vmatprep.subr.mxu0 0.0
    %1689 = vmatpush2.msra.mxu0 0.0
    %1690 = vmatprep.subr.mxu0 0.0
    %1691 = vmatpush2.msra.mxu0 0.0
    %1692 = vmatprep.subr.mxu0 0.0
    %1693 = vmatpush2.msra.mxu0 0.0
    %1694 = vmatprep.subr.mxu0 0.0
    %1695 = vmatpush2.msra.mxu0 0.0
    %1696 = vmatprep.subr.mxu0 0.0
    %1697 = vmatpush2.msra.mxu0 0.0
    %1698 = vmatprep.subr.mxu0 0.0
    %1699 = vmatpush2.msra.mxu0 0.0
    %1700 = vmatprep.subr.mxu0 0.0
    %1701 = vmatpush2.msra.mxu0 0.0
    %1702 = vmatprep.subr.mxu0 0.0
    %1703 = vmatpush2.msra.mxu0 0.0
    %1704 = vmatprep.mubr.f32.mxu0 0.0
    %1705 = vmatmul.mubr.f32.gmra.mxu0 %v1616
    %v1706 = vpop.f32.mrf.mxu0
    %v1707 = vadd.f32 %v1638, %v1706
    %v1708 = vpop.f32.mrf.mxu0
    %1709 = vdwg.mxu0
    %v1710 = vmax.f32 %v1707, 0.0
    %v1711 = vld [vmem:[%s9] sm:$0xff]
    %v1712 = vld [vmem:[%s9 + $0x8] sm:$0xff]
    %v1713 = vld [vmem:[%s9 + $0x10] sm:$0xff]
    %v1714 = vld [vmem:[%s9 + $0x18] sm:$0xff]
    %v1715 = vld [vmem:[%s9 + $0x20] sm:$0xff]
    %v1716 = vld [vmem:[%s9 + $0x28] sm:$0xff]
    %v1717 = vld [vmem:[%s9 + $0x30] sm:$0xff]
    %v1718 = vld [vmem:[%s9 + $0x38] sm:$0xff]
    %v1719 = vld [vmem:[#allocation14] sm:$0x1]
    %v1721 = vlaneseq
    %v1722 = vshrl.u32 %v1721, 7
    %v1723 = vsub.s32 0, %v1722
    %v1724 = vrot.slane %v1719, %v1723
    %vm1726 = vcmask 523264
    %v1728 = vsel %vm1726, %v1710, 0
    %1730 = vmatprep.subr.mxu0 0.0
    %1731 = vmatpush1.msra.mxu0 0.0
    %1732 = vmatprep.subr.mxu0 0.0
    %1733 = vmatpush1.msra.mxu0 0.0
    %1734 = vmatprep.subr.mxu0 0.0
    %1735 = vmatpush1.msra.mxu0 0.0
    %1736 = vmatprep.subr.mxu0 0.0
    %1737 = vmatpush1.msra.mxu0 0.0
    %1738 = vmatprep.subr.mxu0 0.0
    %1739 = vmatpush1.msra.mxu0 0.0
    %1740 = vmatprep.subr.mxu0 0.0
    %1741 = vmatpush1.msra.mxu0 0.0
    %1742 = vmatprep.subr.mxu0 0.0
    %1743 = vmatpush1.msra.mxu0 0.0
    %1744 = vmatprep.subr.mxu0 0.0
    %1745 = vmatpush1.msra.mxu0 0.0
    %1746 = vmatprep.subr.mxu0 0.0
    %1747 = vmatpush1.msra.mxu0 %v1718
    %1748 = vmatprep.subr.mxu0 0.0
    %1749 = vmatpush1.msra.mxu0 %v1717
    %1750 = vmatprep.subr.mxu0 0.0
    %1751 = vmatpush1.msra.mxu0 %v1716
    %1752 = vmatprep.subr.mxu0 0.0
    %1753 = vmatpush1.msra.mxu0 %v1715
    %1754 = vmatprep.subr.mxu0 0.0
    %1755 = vmatpush1.msra.mxu0 %v1714
    %1756 = vmatprep.subr.mxu0 0.0
    %1757 = vmatpush1.msra.mxu0 %v1713
    %1758 = vmatprep.subr.mxu0 0.0
    %1759 = vmatpush1.msra.mxu0 %v1712
    %1760 = vmatprep.subr.mxu0 0.0
    %1761 = vmatpush1.msra.mxu0 %v1711
    %1762 = vmatprep.subr.mxu0 0.0
    %1763 = vmatpush2.msra.mxu0 0.0
    %1764 = vmatprep.subr.mxu0 0.0
    %1765 = vmatpush2.msra.mxu0 0.0
    %1766 = vmatprep.subr.mxu0 0.0
    %1767 = vmatpush2.msra.mxu0 0.0
    %1768 = vmatprep.subr.mxu0 0.0
    %1769 = vmatpush2.msra.mxu0 0.0
    %1770 = vmatprep.subr.mxu0 0.0
    %1771 = vmatpush2.msra.mxu0 0.0
    %1772 = vmatprep.subr.mxu0 0.0
    %1773 = vmatpush2.msra.mxu0 0.0
    %1774 = vmatprep.subr.mxu0 0.0
    %1775 = vmatpush2.msra.mxu0 0.0
    %1776 = vmatprep.subr.mxu0 0.0
    %1777 = vmatpush2.msra.mxu0 0.0
    %1778 = vmatprep.subr.mxu0 0.0
    %1779 = vmatpush2.msra.mxu0 0.0
    %1780 = vmatprep.subr.mxu0 0.0
    %1781 = vmatpush2.msra.mxu0 0.0
    %1782 = vmatprep.subr.mxu0 0.0
    %1783 = vmatpush2.msra.mxu0 0.0
    %1784 = vmatprep.subr.mxu0 0.0
    %1785 = vmatpush2.msra.mxu0 0.0
    %1786 = vmatprep.subr.mxu0 0.0
    %1787 = vmatpush2.msra.mxu0 0.0
    %1788 = vmatprep.subr.mxu0 0.0
    %1789 = vmatpush2.msra.mxu0 0.0
    %1790 = vmatprep.subr.mxu0 0.0
    %1791 = vmatpush2.msra.mxu0 0.0
    %1792 = vmatprep.subr.mxu0 0.0
    %1793 = vmatpush2.msra.mxu0 0.0
    %1794 = vmatprep.mubr.f32.mxu0 0.0
    %1795 = vmatmul.mubr.f32.gmra.mxu0 %v1728
    %v1796 = vpop.f32.mrf.mxu0
    %v1797 = vadd.f32 %v1724, %v1796
    %v1798 = vpop.f32.mrf.mxu0
    %1799 = vdwg.mxu0
    %vm1800 = vcmask 33792
    %1801 = vst.msk [vmem:[#allocation16] sm:$0x3] %vm1800, %v1797
    // Predicated region
    $region78: #{myrmexnet_forward.1} parent=1 // pred_check
      _
    $region79: #{myrmexnet_forward.1} parent=1 // pred_check_branch
      %1803 = sbr.rel (0) target = $region81
    $region80: #{myrmexnet_forward.1} parent=1 // pred_region
      %s1805 = ssub.s32 32, 32
      %1806 = vsyncadd [#allocation4], %s1805
      %s1808 = sshll.u32 [#allocation16], 4
      %s1809 = int_to_ptr.vmem [resolvable:$true] %s1808
      %1811 = dma.vmem_to_hbm [thread:$0]  %s1809, 32, %s11, [#allocation4]
    $region81: #{myrmexnet_forward.1} parent=1 // pred_fallthru
      _
    // Predicated region
    $region82: #{myrmexnet_forward.1} parent=1 // pred_check
      _
    $region83: #{myrmexnet_forward.1} parent=1 // pred_check_branch
      %1813 = sbr.rel (0) target = $region85
    $region84: #{myrmexnet_forward.1} parent=1 // pred_region
      %1814 = dma.done [#allocation4], 32
    $region85: #{myrmexnet_forward.1} parent=1 // pred_fallthru
      _
    %1815 = vsyncpa [#allocation3], 1
    %1816 = vsyncpa [#allocation6], 1
    %1817 = vsyncpa [#allocation9], 1
    %1818 = vsyncpa [#allocation12], 1
    %1819 = vsyncpa [#allocation15], 1
    %1820 = vsyncpa [#allocation4], 1

</llo_original>
